<compile_context>
chip_gen: v7x
topology: tpu7x:2x2x1
jax: 0.10.0
libtpu: 0.0.40
codegen_flags: <defaults>
</compile_context>

<pallas_src>
import functools

import jax
import jax.numpy as jnp
import numpy as np
from jax import lax
from jax.experimental import pallas as pl
from jax.experimental.pallas import tpu as pltpu

# Large finite negative mask value (identical to -inf after exp() for causal
# masking, but avoids inf-inf NaNs if padding/key masks are ever added).
MASK_VALUE = -0.7 * float(np.finfo(np.float32).max)

# Scoped-VMEM budget.  TODO(synk): on v7x (64 MiB physical VMEM) lower this,
# shrink tiles to 256, and single-buffer the constant weight blocks with
# pipeline_mode=pl.Buffered(1); re-sweep per generation.
VMEM_LIMIT_BYTES = 64 * 1024 * 1024


def _pick_tile(t):
    # q/kv tile size: 256 is a safe start on v7x (64 MiB VMEM); sweep up to 512
    # on v5e/v6e (128 MiB).  Tiny sequences fall back to a single full tile.
    return t if t <= 256 else 256


# ---------------------------------------------------------------------------
# Kernel 1: fused QKV projection     qkv[b, tile] = x[b, tile] @ wqkv
# ---------------------------------------------------------------------------
def qkv_proj_kernel(x_ref, wqkv_ref, qkv_ref):
    qkv = jnp.dot(x_ref[0], wqkv_ref[...], preferred_element_type=jnp.float32)
    qkv_ref[0] = qkv.astype(qkv_ref.dtype)


# ---------------------------------------------------------------------------
# Kernel 2: flash attention          grid = (B, H, num_q_tiles, num_kv_tiles)
# ---------------------------------------------------------------------------
def flash_attn_kernel(q_ref, k_ref, v_ref, o_ref, m_sc, l_sc, acc_sc, *, tq, tkv):
    qi = pl.program_id(2)
    ki = pl.program_id(3)

    @pl.when(ki == 0)
    def _init():
        m_sc[...] = jnp.full(m_sc.shape, MASK_VALUE, m_sc.dtype)
        l_sc[...] = jnp.zeros(l_sc.shape, l_sc.dtype)
        acc_sc[...] = jnp.zeros(acc_sc.shape, acc_sc.dtype)

    # Causal tile skip: this kv tile lies entirely above the diagonal.
    @pl.when(ki * tkv <= qi * tq + (tq - 1))
    def _compute():
        q = q_ref[0, 0]                                   # (tq, hd)  bf16, pre-scaled
        k = k_ref[0, 0]                                   # (tkv, hd) bf16
        v = v_ref[0, 0]                                   # (tkv, hd) bf16
        s = jnp.einsum("qd,kd->qk", q, k,
                       preferred_element_type=jnp.float32)  # (tq, tkv) f32

        row = qi * tq + lax.broadcasted_iota(jnp.int32, (tq, tkv), 0)
        col = ki * tkv + lax.broadcasted_iota(jnp.int32, (tq, tkv), 1)
        s = jnp.where(col > row, MASK_VALUE, s)           # strictly-upper -> masked

        m_prev = m_sc[...]
        m_new = jnp.maximum(m_prev, jnp.max(s, axis=-1, keepdims=True))
        alpha = jnp.exp(m_prev - m_new)                   # (tq, 1) f32 (EUP)
        p = jnp.exp(s - m_new)                            # unnormalized probs, f32
        l_sc[...] = alpha * l_sc[...] + jnp.sum(p, axis=-1, keepdims=True)
        acc_sc[...] = alpha * acc_sc[...] + jnp.dot(
            p.astype(v.dtype), v, preferred_element_type=jnp.float32)
        m_sc[...] = m_new
        # TODO(synk): attention-weight dropout omitted (p=0.0 / eval semantics).

    @pl.when(ki == pl.num_programs(3) - 1)
    def _finalize():
        # Deferred normalization: one (tq, 1) reciprocal broadcast over head_dim
        # instead of T^2 probability scaling per head.
        inv_l = pl.reciprocal(l_sc[...], approx=True)
        o_ref[0, 0] = (acc_sc[...] * inv_l).astype(o_ref.dtype)


# ---------------------------------------------------------------------------
# Kernel 3: output projection        out[b, tile] = ctx[b, tile] @ wo + bo
# ---------------------------------------------------------------------------
def out_proj_kernel(ctx_ref, wo_ref, bo_ref, o_ref):
    out = jnp.dot(ctx_ref[0], wo_ref[...], preferred_element_type=jnp.float32)
    o_ref[0] = (out + bo_ref[...]).astype(o_ref.dtype)


# ---------------------------------------------------------------------------
# Wrapper
# ---------------------------------------------------------------------------
def multi_head_attention(x, wq, wk, wv, wo, bo, *, num_heads):
    """x: (B, T, d_in); wq/wk/wv: (d_in, d_out); wo: (d_out, d_out); bo: (1, d_out)."""
    B, T, d_in = x.shape
    d_out = wq.shape[1]
    head_dim = d_out // num_heads
    out_dtype = x.dtype

    tile = _pick_tile(T)
    assert T % tile == 0, "TODO(synk): pad / ragged-tile support for T % tile != 0"
    nt = T // tile

    # Fold softmax scale into the Q weight, fuse QKV, and cast MXU operands to
    # bf16 once at the boundary (f32 accumulation happens inside the kernels).
    scale = 1.0 / (head_dim ** 0.5)
    wqkv = jnp.concatenate([wq * scale, wk, wv], axis=1).astype(jnp.bfloat16)
    wo_bf16 = wo.astype(jnp.bfloat16)
    bo_f32 = bo.astype(jnp.float32)
    x_bf16 = x.astype(jnp.bfloat16)

    # ---- 1) fused QKV projection -------------------------------------------
    qkv = pl.pallas_call(
        qkv_proj_kernel,
        out_shape=jax.ShapeDtypeStruct((B, T, 3 * d_out), jnp.bfloat16),
        grid=(B, nt),
        in_specs=[
            pl.BlockSpec((1, tile, d_in), lambda b, i: (b, i, 0)),
            # TODO(synk): for d_model >= 2048 add a grid axis over the 3*d_out
            # (N) dim of wqkv and single-buffer this constant block
            # (pipeline_mode=pl.Buffered(1)) to fit v7x's 64 MiB VMEM.
            pl.BlockSpec((d_in, 3 * d_out), lambda b, i: (0, 0)),
        ],
        out_specs=pl.BlockSpec((1, tile, 3 * d_out), lambda b, i: (b, i, 0)),
        compiler_params=pltpu.CompilerParams(
            dimension_semantics=("parallel", "parallel"),
            vmem_limit_bytes=VMEM_LIMIT_BYTES),
    )(x_bf16, wqkv)

    # Wrapper-side layout plumbing (not compute): split heads -> (B, H, T, hd)
    # so flash BlockSpecs stay full-dim on the lane axis for any head_dim.
    def split_heads(a):
        return a.reshape(B, T, num_heads, head_dim).transpose(0, 2, 1, 3)

    q = split_heads(qkv[:, :, 0 * d_out:1 * d_out])
    k = split_heads(qkv[:, :, 1 * d_out:2 * d_out])
    v = split_heads(qkv[:, :, 2 * d_out:3 * d_out])

    # ---- 2) flash attention over (B, H, q-tiles, kv-tiles) ------------------
    flash = functools.partial(flash_attn_kernel, tq=tile, tkv=tile)
    ctx = pl.pallas_call(
        flash,
        out_shape=jax.ShapeDtypeStruct((B, num_heads, T, head_dim), jnp.bfloat16),
        grid=(B, num_heads, nt, nt),
        in_specs=[
            pl.BlockSpec((1, 1, tile, head_dim), lambda b, h, qi, ki: (b, h, qi, 0)),
            pl.BlockSpec((1, 1, tile, head_dim), lambda b, h, qi, ki: (b, h, ki, 0)),
            pl.BlockSpec((1, 1, tile, head_dim), lambda b, h, qi, ki: (b, h, ki, 0)),
        ],
        out_specs=pl.BlockSpec((1, 1, tile, head_dim),
                               lambda b, h, qi, ki: (b, h, qi, 0)),
        scratch_shapes=[
            pltpu.VMEM((tile, 1), jnp.float32),           # running max m
            pltpu.VMEM((tile, 1), jnp.float32),           # running sum l
            pltpu.VMEM((tile, head_dim), jnp.float32),    # unnormalized accumulator
        ],
        compiler_params=pltpu.CompilerParams(
            dimension_semantics=("parallel", "parallel", "parallel", "arbitrary"),
            vmem_limit_bytes=VMEM_LIMIT_BYTES),
    )(q, k, v)

    # (B, H, T, hd) -> (B, T, d_out): lane-dense slab for the output projection.
    ctx = ctx.transpose(0, 2, 1, 3).reshape(B, T, d_out)

    # ---- 3) output projection: single deep-K matmul + bias ------------------
    out = pl.pallas_call(
        out_proj_kernel,
        out_shape=jax.ShapeDtypeStruct((B, T, d_out), out_dtype),
        grid=(B, nt),
        in_specs=[
            pl.BlockSpec((1, tile, d_out), lambda b, i: (b, i, 0)),
            pl.BlockSpec((d_out, d_out), lambda b, i: (0, 0)),
            pl.BlockSpec((1, d_out), lambda b, i: (0, 0)),
        ],
        out_specs=pl.BlockSpec((1, tile, d_out), lambda b, i: (b, i, 0)),
        compiler_params=pltpu.CompilerParams(
            dimension_semantics=("parallel", "parallel"),
            vmem_limit_bytes=VMEM_LIMIT_BYTES),
    )(ctx, wo_bf16, bo_f32)

    return out


# ---------------------------------------------------------------------------
# Pure-JAX reference (matches the PyTorch module's forward, dropout p=0)
# ---------------------------------------------------------------------------
def reference_mha(x, wq, wk, wv, wo, bo, *, num_heads):
    B, T, _ = x.shape
    d_out = wq.shape[1]
    head_dim = d_out // num_heads
    q = (x @ wq).reshape(B, T, num_heads, head_dim).transpose(0, 2, 1, 3)
    k = (x @ wk).reshape(B, T, num_heads, head_dim).transpose(0, 2, 1, 3)
    v = (x @ wv).reshape(B, T, num_heads, head_dim).transpose(0, 2, 1, 3)
    scores = jnp.einsum("bhqd,bhkd->bhqk", q, k)
    mask = jnp.triu(jnp.ones((T, T), dtype=bool), k=1)
    scores = jnp.where(mask, -jnp.inf, scores)
    attn = jax.nn.softmax(scores / (head_dim ** 0.5), axis=-1)
    ctx = jnp.einsum("bhqk,bhkd->bhqd", attn, v)
    ctx = ctx.transpose(0, 2, 1, 3).reshape(B, T, d_out)
    return ctx @ wo + bo


if __name__ == "__main__":
    # Small shapes consistent with the module's forward.
    B, T, d_in, d_out, num_heads = 2, 8, 32, 32, 4
    dropout = 0.0  # deterministic (see TODO in kernel 2)

    key = jax.random.PRNGKey(0)
    kx, kq, kk, kv, ko, kb = jax.random.split(key, 6)

    x = jax.random.normal(kx, (B, T, d_in), dtype=jnp.float32)

    # nn.Linear(d_in, d_out) weight is (d_out, d_in); pre-transposed here to
    # (d_in, d_out) so kernels compute y = x @ W.  qkv_bias=False -> no Q/K/V
    # bias; out_proj has a bias.
    scale_in = 1.0 / np.sqrt(d_in)
    scale_out = 1.0 / np.sqrt(d_out)
    wq = jax.random.uniform(kq, (d_in, d_out), jnp.float32, -scale_in, scale_in)
    wk = jax.random.uniform(kk, (d_in, d_out), jnp.float32, -scale_in, scale_in)
    wv = jax.random.uniform(kv, (d_in, d_out), jnp.float32, -scale_in, scale_in)
    wo = jax.random.uniform(ko, (d_out, d_out), jnp.float32, -scale_out, scale_out)
    bo = jax.random.uniform(kb, (1, d_out), jnp.float32, -scale_out, scale_out)

    mha = jax.jit(functools.partial(multi_head_attention, num_heads=num_heads))
    out = jax.block_until_ready(mha(x, wq, wk, wv, wo, bo))

    ref = reference_mha(x, wq, wk, wv, wo, bo, num_heads=num_heads)
    # Kernel feeds bf16 operands to the MXU (f32 accumulation) and uses an
    # approximate reciprocal in the softmax denominator -> ~1% deviation.
    np.testing.assert_allclose(np.asarray(out), np.asarray(ref), rtol=2e-2, atol=2e-2)

    print("KERNEL_OK")
</pallas_src>

<mosaic_0001>
module attributes {stable_mosaic.version = 11 : i64} {
  func.func @qkv_proj_kernel(%arg0: i32, %arg1: i32, %arg2: memref<1x8x32xbf16, #tpu.memory_space<vmem>>, %arg3: memref<32x96xbf16, #tpu.memory_space<vmem>>, %arg4: memref<1x8x96xbf16, #tpu.memory_space<vmem>>) attributes {dimension_semantics = [#tpu.dimension_semantics<parallel>, #tpu.dimension_semantics<parallel>], iteration_bounds = array<i64: 2, 1>, scalar_prefetch = 0 : i64, scratch_operands = 0 : i64, tpu.core_type = #tpu.core_type<tc>, window_params = [{transform_indices = @transform_0, window_bounds = array<i64: 1, 8, 32>}, {pipeline_mode = #tpu.pipeline_mode<synchronous>, transform_indices = @transform_1, window_bounds = array<i64: 32, 96>}, {transform_indices = @transform_2, window_bounds = array<i64: 1, 8, 96>}]} {
    %c0 = arith.constant 0 : index
    %c0_0 = arith.constant 0 : index
    %c0_1 = arith.constant 0 : index
    %0 = vector.load %arg2[%c0, %c0_0, %c0_1] : memref<1x8x32xbf16, #tpu.memory_space<vmem>>, vector<1x8x32xbf16>
    %1 = vector.shape_cast %0 : vector<1x8x32xbf16> to vector<8x32xbf16>
    %c0_2 = arith.constant 0 : index
    %c0_3 = arith.constant 0 : index
    %2 = vector.load %arg3[%c0_2, %c0_3] : memref<32x96xbf16, #tpu.memory_space<vmem>>, vector<32x96xbf16>
    %cst = arith.constant dense<0.000000e+00> : vector<8x96xf32>
    %3 = tpu.matmul %1, %2, %cst {dimension_numbers = #tpu.dot_dimension_numbers<[1], [0], [0], [1], [0, 0, 1, 1], [], []>} : vector<8x32xbf16>, vector<32x96xbf16>, vector<8x96xf32> -> vector<8x96xf32>
    %4 = arith.truncf %3 : vector<8x96xf32> to vector<8x96xbf16>
    %c0_4 = arith.constant 0 : index
    %c0_5 = arith.constant 0 : index
    %c0_6 = arith.constant 0 : index
    %5 = vector.load %arg4[%c0_4, %c0_5, %c0_6] : memref<1x8x96xbf16, #tpu.memory_space<vmem>>, vector<1x8x96xbf16>
    %6 = vector.shape_cast %5 : vector<1x8x96xbf16> to vector<8x96xbf16>
    %7 = vector.shape_cast %4 : vector<8x96xbf16> to vector<1x8x96xbf16>
    tpu.vector_store %arg4[%c0_4, %c0_5, %c0_6], %7 {strides = array<i32>} : memref<1x8x96xbf16, #tpu.memory_space<vmem>>, vector<1x8x96xbf16>,
    return
  }
  func.func @transform_0(%arg0: i32, %arg1: i32) -> (i32, i32, i32) {
    %c0_i32 = arith.constant 0 : i32
    %c0_i32_0 = arith.constant 0 : i32
    return %arg0, %arg1, %c0_i32 : i32, i32, i32
  }
  func.func @transform_1(%arg0: i32, %arg1: i32) -> (i32, i32) {
    %c0_i32 = arith.constant 0 : i32
    %c0_i32_0 = arith.constant 0 : i32
    %c0_i32_1 = arith.constant 0 : i32
    return %c0_i32, %c0_i32_0 : i32, i32
  }
  func.func @transform_2(%arg0: i32, %arg1: i32) -> (i32, i32, i32) {
    %c0_i32 = arith.constant 0 : i32
    %c0_i32_0 = arith.constant 0 : i32
    return %arg0, %arg1, %c0_i32 : i32, i32, i32
  }
}

module attributes {stable_mosaic.version = 11 : i64} {
  func.func @out_proj_kernel(%arg0: i32, %arg1: i32, %arg2: memref<1x8x32xbf16, #tpu.memory_space<vmem>>, %arg3: memref<32x32xbf16, #tpu.memory_space<vmem>>, %arg4: memref<1x32xf32, #tpu.memory_space<vmem>>, %arg5: memref<1x8x32xf32, #tpu.memory_space<vmem>>) attributes {dimension_semantics = [#tpu.dimension_semantics<parallel>, #tpu.dimension_semantics<parallel>], iteration_bounds = array<i64: 2, 1>, scalar_prefetch = 0 : i64, scratch_operands = 0 : i64, tpu.core_type = #tpu.core_type<tc>, window_params = [{transform_indices = @transform_0, window_bounds = array<i64: 1, 8, 32>}, {pipeline_mode = #tpu.pipeline_mode<synchronous>, transform_indices = @transform_1, window_bounds = array<i64: 32, 32>}, {pipeline_mode = #tpu.pipeline_mode<synchronous>, transform_indices = @transform_2, window_bounds = array<i64: 1, 32>}, {transform_indices = @transform_3, window_bounds = array<i64: 1, 8, 32>}]} {
    %c0 = arith.constant 0 : index
    %c0_0 = arith.constant 0 : index
    %c0_1 = arith.constant 0 : index
    %0 = vector.load %arg2[%c0, %c0_0, %c0_1] : memref<1x8x32xbf16, #tpu.memory_space<vmem>>, vector<1x8x32xbf16>
    %1 = vector.shape_cast %0 : vector<1x8x32xbf16> to vector<8x32xbf16>
    %c0_2 = arith.constant 0 : index
    %c0_3 = arith.constant 0 : index
    %2 = vector.load %arg3[%c0_2, %c0_3] : memref<32x32xbf16, #tpu.memory_space<vmem>>, vector<32x32xbf16>
    %cst = arith.constant dense<0.000000e+00> : vector<8x32xf32>
    %3 = tpu.matmul %1, %2, %cst {dimension_numbers = #tpu.dot_dimension_numbers<[1], [0], [0], [1], [0, 0, 1, 1], [], []>} : vector<8x32xbf16>, vector<32x32xbf16>, vector<8x32xf32> -> vector<8x32xf32>
    %c0_4 = arith.constant 0 : index
    %c0_5 = arith.constant 0 : index
    %4 = vector.load %arg4[%c0_4, %c0_5] : memref<1x32xf32, #tpu.memory_space<vmem>>, vector<1x32xf32>
    %5 = vector.broadcast %4 : vector<1x32xf32> to vector<8x32xf32>
    %6 = arith.addf %3, %5 : vector<8x32xf32>
    %c0_6 = arith.constant 0 : index
    %c0_7 = arith.constant 0 : index
    %c0_8 = arith.constant 0 : index
    %7 = vector.load %arg5[%c0_6, %c0_7, %c0_8] : memref<1x8x32xf32, #tpu.memory_space<vmem>>, vector<1x8x32xf32>
    %8 = vector.shape_cast %7 : vector<1x8x32xf32> to vector<8x32xf32>
    %9 = vector.shape_cast %6 : vector<8x32xf32> to vector<1x8x32xf32>
    tpu.vector_store %arg5[%c0_6, %c0_7, %c0_8], %9 {strides = array<i32>} : memref<1x8x32xf32, #tpu.memory_space<vmem>>, vector<1x8x32xf32>,
    return
  }
  func.func @transform_0(%arg0: i32, %arg1: i32) -> (i32, i32, i32) {
    %c0_i32 = arith.constant 0 : i32
    %c0_i32_0 = arith.constant 0 : i32
    return %arg0, %arg1, %c0_i32 : i32, i32, i32
  }
  func.func @transform_1(%arg0: i32, %arg1: i32) -> (i32, i32) {
    %c0_i32 = arith.constant 0 : i32
    %c0_i32_0 = arith.constant 0 : i32
    %c0_i32_1 = arith.constant 0 : i32
    return %c0_i32, %c0_i32_0 : i32, i32
  }
  func.func @transform_2(%arg0: i32, %arg1: i32) -> (i32, i32) {
    %c0_i32 = arith.constant 0 : i32
    %c0_i32_0 = arith.constant 0 : i32
    %c0_i32_1 = arith.constant 0 : i32
    return %c0_i32, %c0_i32_0 : i32, i32
  }
  func.func @transform_3(%arg0: i32, %arg1: i32) -> (i32, i32, i32) {
    %c0_i32 = arith.constant 0 : i32
    %c0_i32_0 = arith.constant 0 : i32
    return %arg0, %arg1, %c0_i32 : i32, i32, i32
  }
}

module attributes {stable_mosaic.version = 11 : i64} {
  func.func @flash_attn_kernel(%arg0: i32, %arg1: i32, %arg2: i32, %arg3: i32, %arg4: memref<1x1x8x8xbf16, #tpu.memory_space<vmem>>, %arg5: memref<1x1x8x8xbf16, #tpu.memory_space<vmem>>, %arg6: memref<1x1x8x8xbf16, #tpu.memory_space<vmem>>, %arg7: memref<1x1x8x8xbf16, #tpu.memory_space<vmem>>, %arg8: memref<8x1xf32, #tpu.memory_space<vmem>>, %arg9: memref<8x1xf32, #tpu.memory_space<vmem>>, %arg10: memref<8x8xf32, #tpu.memory_space<vmem>>) attributes {dimension_semantics = [#tpu.dimension_semantics<parallel>, #tpu.dimension_semantics<parallel>, #tpu.dimension_semantics<parallel>, #tpu.dimension_semantics<arbitrary>], iteration_bounds = array<i64: 2, 4, 1, 1>, scalar_prefetch = 0 : i64, scratch_operands = 3 : i64, tpu.core_type = #tpu.core_type<tc>, window_params = [{transform_indices = @transform_0, window_bounds = array<i64: 1, 1, 8, 8>}, {transform_indices = @transform_1, window_bounds = array<i64: 1, 1, 8, 8>}, {transform_indices = @transform_2, window_bounds = array<i64: 1, 1, 8, 8>}, {transform_indices = @transform_3, window_bounds = array<i64: 1, 1, 8, 8>}]} {
    %c0_i32 = arith.constant 0 : i32
    %0 = arith.cmpi eq, %arg3, %c0_i32 : i32
    %1 = arith.extui %0 : i1 to i32
    %c0_i32_0 = arith.constant 0 : i32
    %2 = arith.cmpi ne, %1, %c0_i32_0 : i32
    scf.if %2 {
      %cst = arith.constant -2.38197633E+38 : f32
      %12 = vector.broadcast %cst : f32 to vector<8x1xf32>
      %c0 = arith.constant 0 : index
      %c0_5 = arith.constant 0 : index
      %13 = vector.load %arg8[%c0, %c0_5] : memref<8x1xf32, #tpu.memory_space<vmem>>, vector<8x1xf32>
      tpu.vector_store %arg8[%c0, %c0_5], %12 {strides = array<i32>} : memref<8x1xf32, #tpu.memory_space<vmem>>, vector<8x1xf32>,
      %cst_6 = arith.constant 0.000000e+00 : f32
      %14 = vector.broadcast %cst_6 : f32 to vector<8x1xf32>
      %c0_7 = arith.constant 0 : index
      %c0_8 = arith.constant 0 : index
      %15 = vector.load %arg9[%c0_7, %c0_8] : memref<8x1xf32, #tpu.memory_space<vmem>>, vector<8x1xf32>
      tpu.vector_store %arg9[%c0_7, %c0_8], %14 {strides = array<i32>} : memref<8x1xf32, #tpu.memory_space<vmem>>, vector<8x1xf32>,
      %cst_9 = arith.constant 0.000000e+00 : f32
      %16 = vector.broadcast %cst_9 : f32 to vector<8x8xf32>
      %c0_10 = arith.constant 0 : index
      %c0_11 = arith.constant 0 : index
      %17 = vector.load %arg10[%c0_10, %c0_11] : memref<8x8xf32, #tpu.memory_space<vmem>>, vector<8x8xf32>
      tpu.vector_store %arg10[%c0_10, %c0_11], %16 {strides = array<i32>} : memref<8x8xf32, #tpu.memory_space<vmem>>, vector<8x8xf32>,
    } else {
    }
    %c8_i32 = arith.constant 8 : i32
    %3 = arith.muli %arg3, %c8_i32 : i32
    %c8_i32_1 = arith.constant 8 : i32
    %4 = arith.muli %arg2, %c8_i32_1 : i32
    %c7_i32 = arith.constant 7 : i32
    %5 = arith.addi %4, %c7_i32 : i32
    %6 = arith.cmpi sle, %3, %5 : i32
    %7 = arith.extui %6 : i1 to i32
    %c0_i32_2 = arith.constant 0 : i32
    %8 = arith.cmpi ne, %7, %c0_i32_2 : i32
    scf.if %8 {
      %c0 = arith.constant 0 : index
      %c0_5 = arith.constant 0 : index
      %c0_6 = arith.constant 0 : index
      %c0_7 = arith.constant 0 : index
      %12 = vector.load %arg4[%c0, %c0_5, %c0_6, %c0_7] : memref<1x1x8x8xbf16, #tpu.memory_space<vmem>>, vector<1x1x8x8xbf16>
      %13 = vector.shape_cast %12 : vector<1x1x8x8xbf16> to vector<8x8xbf16>
      %c0_8 = arith.constant 0 : index
      %c0_9 = arith.constant 0 : index
      %c0_10 = arith.constant 0 : index
      %c0_11 = arith.constant 0 : index
      %14 = vector.load %arg5[%c0_8, %c0_9, %c0_10, %c0_11] : memref<1x1x8x8xbf16, #tpu.memory_space<vmem>>, vector<1x1x8x8xbf16>
      %15 = vector.shape_cast %14 : vector<1x1x8x8xbf16> to vector<8x8xbf16>
      %c0_12 = arith.constant 0 : index
      %c0_13 = arith.constant 0 : index
      %c0_14 = arith.constant 0 : index
      %c0_15 = arith.constant 0 : index
      %16 = vector.load %arg6[%c0_12, %c0_13, %c0_14, %c0_15] : memref<1x1x8x8xbf16, #tpu.memory_space<vmem>>, vector<1x1x8x8xbf16>
      %17 = vector.shape_cast %16 : vector<1x1x8x8xbf16> to vector<8x8xbf16>
      "tpu.trace_start"() <{level = 10 : i32, message = "qd,kd->qk"}> : () -> ()
      %cst = arith.constant dense<0.000000e+00> : vector<8x8xf32>
      %18 = tpu.matmul %13, %15, %cst {dimension_numbers = #tpu.dot_dimension_numbers<[1], [1], [0], [0], [0, 0, 1, 0], [], []>} : vector<8x8xbf16>, vector<8x8xbf16>, vector<8x8xf32> -> vector<8x8xf32>
      "tpu.trace_stop"() : () -> ()
      %c8_i32_16 = arith.constant 8 : i32
      %19 = arith.muli %arg2, %c8_i32_16 : i32
      %20 = tpu.iota {dimensions = array<i32: 0>} : vector<8x8xi32>
      %21 = vector.broadcast %19 : i32 to vector<8x8xi32>
      %22 = arith.addi %21, %20 : vector<8x8xi32>
      %c8_i32_17 = arith.constant 8 : i32
      %23 = arith.muli %arg3, %c8_i32_17 : i32
      %24 = tpu.iota {dimensions = array<i32: 1>} : vector<8x8xi32>
      %25 = vector.broadcast %23 : i32 to vector<8x8xi32>
      %26 = arith.addi %25, %24 : vector<8x8xi32>
      %27 = arith.cmpi sgt, %26, %22 : vector<8x8xi32>
      %cst_18 = arith.constant -2.38197633E+38 : f32
      %28 = vector.broadcast %cst_18 : f32 to vector<8x8xf32>
      %29 = arith.select %27, %28, %18 : vector<8x8xi1>, vector<8x8xf32>
      %c0_19 = arith.constant 0 : index
      %c0_20 = arith.constant 0 : index
      %30 = vector.load %arg8[%c0_19, %c0_20] : memref<8x1xf32, #tpu.memory_space<vmem>>, vector<8x1xf32>
      %cst_21 = arith.constant dense<0xFF800000> : vector<8xf32>
      %31 = vector.multi_reduction <maximumf>, %29, %cst_21 [1] : vector<8x8xf32> to vector<8xf32>
      %32 = vector.shape_cast %31 : vector<8xf32> to vector<8x1xf32>
      %33 = arith.maximumf %30, %32 : vector<8x1xf32>
      %34 = arith.subf %30, %33 : vector<8x1xf32>
      %35 = math.exp %34 : vector<8x1xf32>
      %36 = vector.broadcast %33 : vector<8x1xf32> to vector<8x8xf32>
      %37 = arith.subf %29, %36 : vector<8x8xf32>
      %38 = math.exp %37 : vector<8x8xf32>
      %c0_22 = arith.constant 0 : index
      %c0_23 = arith.constant 0 : index
      %39 = vector.load %arg9[%c0_22, %c0_23] : memref<8x1xf32, #tpu.memory_space<vmem>>, vector<8x1xf32>
      %40 = arith.mulf %35, %39 : vector<8x1xf32>
      %cst_24 = arith.constant dense<0.000000e+00> : vector<8xf32>
      %41 = vector.multi_reduction <add>, %38, %cst_24 [1] : vector<8x8xf32> to vector<8xf32>
      %42 = vector.shape_cast %41 : vector<8xf32> to vector<8x1xf32>
      %43 = arith.addf %40, %42 : vector<8x1xf32>
      %c0_25 = arith.constant 0 : index
      %c0_26 = arith.constant 0 : index
      %44 = vector.load %arg9[%c0_25, %c0_26] : memref<8x1xf32, #tpu.memory_space<vmem>>, vector<8x1xf32>
      tpu.vector_store %arg9[%c0_25, %c0_26], %43 {strides = array<i32>} : memref<8x1xf32, #tpu.memory_space<vmem>>, vector<8x1xf32>,
      %c0_27 = arith.constant 0 : index
      %c0_28 = arith.constant 0 : index
      %45 = vector.load %arg10[%c0_27, %c0_28] : memref<8x8xf32, #tpu.memory_space<vmem>>, vector<8x8xf32>
      %46 = vector.broadcast %35 : vector<8x1xf32> to vector<8x8xf32>
      %47 = arith.mulf %46, %45 : vector<8x8xf32>
      %48 = arith.truncf %38 : vector<8x8xf32> to vector<8x8xbf16>
      %cst_29 = arith.constant dense<0.000000e+00> : vector<8x8xf32>
      %49 = tpu.matmul %48, %17, %cst_29 {dimension_numbers = #tpu.dot_dimension_numbers<[1], [0], [0], [1], [0, 0, 1, 1], [], []>} : vector<8x8xbf16>, vector<8x8xbf16>, vector<8x8xf32> -> vector<8x8xf32>
      %50 = arith.addf %47, %49 : vector<8x8xf32>
      %c0_30 = arith.constant 0 : index
      %c0_31 = arith.constant 0 : index
      %51 = vector.load %arg10[%c0_30, %c0_31] : memref<8x8xf32, #tpu.memory_space<vmem>>, vector<8x8xf32>
      tpu.vector_store %arg10[%c0_30, %c0_31], %50 {strides = array<i32>} : memref<8x8xf32, #tpu.memory_space<vmem>>, vector<8x8xf32>,
      %c0_32 = arith.constant 0 : index
      %c0_33 = arith.constant 0 : index
      %52 = vector.load %arg8[%c0_32, %c0_33] : memref<8x1xf32, #tpu.memory_space<vmem>>, vector<8x1xf32>
      tpu.vector_store %arg8[%c0_32, %c0_33], %33 {strides = array<i32>} : memref<8x1xf32, #tpu.memory_space<vmem>>, vector<8x1xf32>,
    } else {
    }
    %c0_i32_3 = arith.constant 0 : i32
    %9 = arith.cmpi eq, %arg3, %c0_i32_3 : i32
    %10 = arith.extui %9 : i1 to i32
    %c0_i32_4 = arith.constant 0 : i32
    %11 = arith.cmpi ne, %10, %c0_i32_4 : i32
    scf.if %11 {
      %c0 = arith.constant 0 : index
      %c0_5 = arith.constant 0 : index
      %12 = vector.load %arg9[%c0, %c0_5] : memref<8x1xf32, #tpu.memory_space<vmem>>, vector<8x1xf32>
      %13 = tpu.reciprocal %12 {approx = true} : vector<8x1xf32> -> vector<8x1xf32>
      %c0_6 = arith.constant 0 : index
      %c0_7 = arith.constant 0 : index
      %14 = vector.load %arg10[%c0_6, %c0_7] : memref<8x8xf32, #tpu.memory_space<vmem>>, vector<8x8xf32>
      %15 = vector.broadcast %13 : vector<8x1xf32> to vector<8x8xf32>
      %16 = arith.mulf %14, %15 : vector<8x8xf32>
      %17 = arith.truncf %16 : vector<8x8xf32> to vector<8x8xbf16>
      %c0_8 = arith.constant 0 : index
      %c0_9 = arith.constant 0 : index
      %c0_10 = arith.constant 0 : index
      %c0_11 = arith.constant 0 : index
      %18 = vector.load %arg7[%c0_8, %c0_9, %c0_10, %c0_11] : memref<1x1x8x8xbf16, #tpu.memory_space<vmem>>, vector<1x1x8x8xbf16>
      %19 = vector.shape_cast %18 : vector<1x1x8x8xbf16> to vector<8x8xbf16>
      %20 = vector.shape_cast %17 : vector<8x8xbf16> to vector<1x1x8x8xbf16>
      tpu.vector_store %arg7[%c0_8, %c0_9, %c0_10, %c0_11], %20 {strides = array<i32>} : memref<1x1x8x8xbf16, #tpu.memory_space<vmem>>, vector<1x1x8x8xbf16>,
    } else {
    }
    return
  }
  func.func @transform_0(%arg0: i32, %arg1: i32, %arg2: i32, %arg3: i32) -> (i32, i32, i32, i32) {
    %c0_i32 = arith.constant 0 : i32
    %c0_i32_0 = arith.constant 0 : i32
    return %arg0, %arg1, %arg2, %c0_i32 : i32, i32, i32, i32
  }
  func.func @transform_1(%arg0: i32, %arg1: i32, %arg2: i32, %arg3: i32) -> (i32, i32, i32, i32) {
    %c0_i32 = arith.constant 0 : i32
    %c0_i32_0 = arith.constant 0 : i32
    return %arg0, %arg1, %arg3, %c0_i32 : i32, i32, i32, i32
  }
  func.func @transform_2(%arg0: i32, %arg1: i32, %arg2: i32, %arg3: i32) -> (i32, i32, i32, i32) {
    %c0_i32 = arith.constant 0 : i32
    %c0_i32_0 = arith.constant 0 : i32
    return %arg0, %arg1, %arg3, %c0_i32 : i32, i32, i32, i32
  }
  func.func @transform_3(%arg0: i32, %arg1: i32, %arg2: i32, %arg3: i32) -> (i32, i32, i32, i32) {
    %c0_i32 = arith.constant 0 : i32
    %c0_i32_0 = arith.constant 0 : i32
    return %arg0, %arg1, %arg2, %c0_i32 : i32, i32, i32, i32
  }
}

</mosaic_0001>

<llo_original>
// kernel: multi_head_attention.3
$region0: #{multi_head_attention.3}
  #allocation0 [shape = 'u32[]', space=smem, size = 0x4, offset = 0x4, fixed_abs, tag = 'smem constant byte address 0x4 - core index']
  #allocation1 [shape = 'u32[144,128]{1,0:T(1,128)}', space=vmem, size = 0x12000, scoped, tag = 'internal scratch']
  %s0 = inlined_call_operand.hbm [shape: bf16[2,8,32], index: 0, kind: input, shape index: {}]
  %s1 = inlined_call_operand.hbm [shape: bf16[32,96], index: 1, kind: input, shape index: {}]
  %s2 = inlined_call_operand.hbm [shape: bf16[2,8,96], index: 2, kind: output, shape index: {}]
  %s3 = sld [smem:[#allocation0]]
  $region49: #{multi_head_attention.3} parent=0
    _
  %s5 = ssub.s32 1, %s3
  %s6 = scalar_select 0, %s5, %s3
  $region1: #{multi_head_attention.3} parent=0
    #allocation2 [shape = 'u8[4096]{0}', space=vmem, size = 0x1000, scoped, tag = 'input window, operand 0']
    #allocation3 [shape = 's32[2]{0}', space=sflag, size = 0x8, scoped, tag = 'scoped memory for multi_head_attention.3']
    #allocation4 [shape = 's32[2]{0}', space=sflag, size = 0x8, scoped, tag = 'scoped memory for multi_head_attention.3']
    #allocation5 [shape = 'u8[8192]{0}', space=vmem, size = 0x2000, scoped, tag = 'input window, operand 1, single buffered']
    #allocation6 [shape = 's32[1]{0}', space=sflag, size = 0x4, scoped, tag = 'scoped memory for multi_head_attention.3']
    #allocation7 [shape = 'u8[4096]{0}', space=vmem, size = 0x1000, scoped, tag = 'output window, operand 0']
    %7 = vsyncpa [#allocation3], 0
    %s8 = scalar_lea.sflag [#allocation3], 1
    %9 = vsyncpa %s8, 0
    %10 = vsyncpa [#allocation6], 0
    %11 = vsyncpa [#allocation4], 0
    %s12 = scalar_lea.sflag [#allocation4], 1
    %13 = vsyncpa %s12, 0
    loop: start=0, step=1, limit=4
    $region2: #{multi_head_attention.3} parent=1 // loop_pre_header
      _
    $region3: #{multi_head_attention.3} parent=1 // loop_header
      %s15 = sphi 0, %s19
      %p16 = scmp.ge.s32.totalorder %s15, 4
      %s22 = sphi 0, %s34
      %s23 = sphi 0, %s30
      %s24 = sphi 0, %s22
      %s25 = sphi 0, %s23
      %s26 = sphi 0, %s24
      %s27 = sphi 0, %s25
      %s39 = sphi 0, %s41
      %s42 = sphi 0, %s39
      %s43 = sphi 0, %s42
      %s59 = sphi 0, %s43
      %s63 = sphi 0, %s63
      %s65 = sphi 0, %s63
      %s66 = sphi 0, %s65
      %s80 = sphi 0, %s66
      %s88 = sphi 0, %s90
      %s91 = sphi 0, %s88
      %s92 = sphi 0, %s91
      %s108 = sphi 0, %s92
    $region4: #{multi_head_attention.3} parent=1 // loop_header_branch
      %18 = sbr.rel (%p16) target = $region8
    $region5: #{multi_head_attention.3} parent=1 // loop_body
      %s20 = ssub.s32 %s15, 1
      %s21 = ssub.s32 %s15, 2
      %s28 = sadd.s32 1, %s23
      %p29 = scmp.ge.s32.totalorder %s28, 1
      %s30 = scalar_select %p29, 0, %s28
      %s31 = sadd.s32 1, %s22
      %s32 = scalar_select %p29, %s31, %s22
      %p33 = scmp.ge.s32.totalorder %s32, 2
      %s34 = scalar_select %p33, 0, %s32
      %s35 = ssub.s32 %s22, %s34
      %s36 = ssub.s32 %s23, %s30
      %s37 = sor.u32 %s35, %s36
      %p38 = scmp.eq.s32.totalorder %s37, 0
      %s40 = sadd.s32 %s39, 1
      %s41 = scalar_select %p38, %s39, %s40
      %p44 = pneg %p38
      %p45 = scmp.eq.s32.totalorder %s15, 1
      %p46 = por %p44, %p45
      %p47 = scmp.ne.s32.totalorder %s39, %s42
      %p48 = scmp.eq.s32.totalorder %s15, 0
      %p49 = por %p47, %p48
      %p50 = scmp.ne.s32.totalorder %s39, %s42
      %p51 = scmp.eq.s32.totalorder %s20, 1
      %p52 = por %p50, %p51
      %p53 = scmp.ne.s32.totalorder %s42, %s43
      %p54 = scmp.eq.s32.totalorder %s20, 0
      %p55 = por %p53, %p54
      %p56 = scmp.ne.s32.totalorder %s42, %s43
      %p57 = scmp.eq.s32.totalorder %s21, 1
      %p58 = por %p56, %p57
      %p60 = scmp.ne.s32.totalorder %s43, %s59
      %p61 = scmp.eq.s32.totalorder %s21, 0
      %p62 = por %p60, %p61
      %s64 = sadd.s32 %s63, 1
      %p67 = scmp.eq.s32.totalorder %s15, 1
      %p68 = scmp.ne.s32.totalorder %s63, %s65
      %p69 = scmp.eq.s32.totalorder %s15, 0
      %p70 = por %p68, %p69
      %p71 = scmp.ne.s32.totalorder %s63, %s65
      %p72 = scmp.eq.s32.totalorder %s20, 1
      %p73 = por %p71, %p72
      %p74 = scmp.ne.s32.totalorder %s65, %s66
      %p75 = scmp.eq.s32.totalorder %s20, 0
      %p76 = por %p74, %p75
      %p77 = scmp.ne.s32.totalorder %s65, %s66
      %p78 = scmp.eq.s32.totalorder %s21, 1
      %p79 = por %p77, %p78
      %p81 = scmp.ne.s32.totalorder %s66, %s80
      %p82 = scmp.eq.s32.totalorder %s21, 0
      %p83 = por %p81, %p82
      %s84 = ssub.s32 %s22, %s34
      %s85 = ssub.s32 %s23, %s30
      %s86 = sor.u32 %s84, %s85
      %p87 = scmp.eq.s32.totalorder %s86, 0
      %s89 = sadd.s32 %s88, 1
      %s90 = scalar_select %p87, %s88, %s89
      %p93 = pneg %p87
      %p94 = scmp.eq.s32.totalorder %s15, 1
      %p95 = por %p93, %p94
      %p96 = scmp.ne.s32.totalorder %s88, %s91
      %p97 = scmp.eq.s32.totalorder %s15, 0
      %p98 = por %p96, %p97
      %p99 = scmp.ne.s32.totalorder %s88, %s91
      %p100 = scmp.eq.s32.totalorder %s20, 1
      %p101 = por %p99, %p100
      %p102 = scmp.ne.s32.totalorder %s91, %s92
      %p103 = scmp.eq.s32.totalorder %s20, 0
      %p104 = por %p102, %p103
      %p105 = scmp.ne.s32.totalorder %s91, %s92
      %p106 = scmp.eq.s32.totalorder %s21, 1
      %p107 = por %p105, %p106
      %p109 = scmp.ne.s32.totalorder %s92, %s108
      %p110 = scmp.eq.s32.totalorder %s21, 0
      %p111 = por %p109, %p110
      %p112 = scmp.le.s32.totalorder 1, %s15
      %p113 = scmp.lt.s32.totalorder %s15, 3
      %p114 = pnand %p112, %p113
      %p115 = pneg %p114
      // Predicated region
      $region9: #{multi_head_attention.3} parent=5 // pred_check
        _
      $region10: #{multi_head_attention.3} parent=5 // pred_check_branch
        %117 = sbr.rel (%p114) target = $region12
      $region11: #{multi_head_attention.3} parent=5 // pred_region
        %s118 = ssub.s32 %s15, 1
        // Predicated region
        $region13: #{multi_head_attention.3} parent=11 // pred_check
          %p119 = pneg %p76
        $region14: #{multi_head_attention.3} parent=11 // pred_check_branch
          %121 = sbr.rel (%p119) target = $region16
        $region15: #{multi_head_attention.3} parent=11 // pred_region
          %s123 = ssub.s32 256, 256
          %124 = vsyncadd [#allocation6], %s123
          %s125 = sshll.u32 [#allocation5], 4
          %s126 = int_to_ptr.vmem [resolvable:$true] %s125
          %131 = dma.hbm_to_vmem [thread:$0]  %s1, 256, %s126, [#allocation6], 64, 64, 4
        $region16: #{multi_head_attention.3} parent=11 // pred_fallthru
          _
      $region12: #{multi_head_attention.3} parent=5 // pred_fallthru
        _
      %p132 = scmp.lt.s32.totalorder %s15, 2
      // Predicated region
      $region17: #{multi_head_attention.3} parent=5 // pred_check
        %p133 = pneg %p132
      $region18: #{multi_head_attention.3} parent=5 // pred_check_branch
        %135 = sbr.rel (%p133) target = $region20
      $region19: #{multi_head_attention.3} parent=5 // pred_region
        // Predicated region
        $region21: #{multi_head_attention.3} parent=19 // pred_check
          %p136 = pneg %p49
        $region22: #{multi_head_attention.3} parent=19 // pred_check_branch
          %138 = sbr.rel (%p136) target = $region24
        $region23: #{multi_head_attention.3} parent=19 // pred_region
          %s139 = sand.u32 %s39, 1
          %s140 = scalar_lea.sflag [#allocation3], %s139
          %s141 = sand.u32 %s39, 1
          %s142 = smul.addr %s141, 4
          %s143 = scalar_lea.vmem [#allocation2], %s142
          %s145 = ssub.s32 64, 64
          %146 = vsyncadd %s140, %s145
          %s147 = sadd.s32 %s23, %s22
          %s148 = smul.addr %s147, 64
          %s149 = scalar_lea.hbm %s0, %s148
          %s151 = sshll.u32 %s143, 4
          %s152 = int_to_ptr.vmem [resolvable:$true] %s151
          %154 = dma.hbm_to_vmem [thread:$0]  %s149, 64, %s152, %s140
        $region24: #{multi_head_attention.3} parent=19 // pred_fallthru
          _
      $region20: #{multi_head_attention.3} parent=5 // pred_fallthru
        _
      %p155 = scmp.le.s32.totalorder 1, %s15
      %p156 = scmp.lt.s32.totalorder %s15, 3
      %p157 = pnand %p155, %p156
      %p158 = pneg %p157
      // Predicated region
      $region25: #{multi_head_attention.3} parent=5 // pred_check
        _
      $region26: #{multi_head_attention.3} parent=5 // pred_check_branch
        %160 = sbr.rel (%p157) target = $region28
      $region27: #{multi_head_attention.3} parent=5 // pred_region
        %s161 = ssub.s32 %s15, 1
        %s162 = sand.u32 %s42, 1
        %s163 = scalar_lea.sflag [#allocation3], %s162
        %s164 = sand.u32 %s42, 1
        %s165 = smul.addr %s164, 4
        %s166 = scalar_lea.vmem [#allocation2], %s165
        // Predicated region
        $region29: #{multi_head_attention.3} parent=27 // pred_check
          %p167 = pneg %p55
        $region30: #{multi_head_attention.3} parent=27 // pred_check_branch
          %169 = sbr.rel (%p167) target = $region32
        $region31: #{multi_head_attention.3} parent=27 // pred_region
          %170 = dma.done %s163, 64
        $region32: #{multi_head_attention.3} parent=27 // pred_fallthru
          _
        // Predicated region
        $region33: #{multi_head_attention.3} parent=27 // pred_check
          %p171 = pneg %p76
        $region34: #{multi_head_attention.3} parent=27 // pred_check_branch
          %173 = sbr.rel (%p171) target = $region36
        $region35: #{multi_head_attention.3} parent=27 // pred_region
          %174 = dma.done [#allocation6], 256
        $region36: #{multi_head_attention.3} parent=27 // pred_fallthru
          _
        %s175 = sand.u32 %s42, 1
        %s176 = scalar_lea.sflag [#allocation3], %s175
        %s177 = sand.u32 %s42, 1
        %s178 = smul.addr %s177, 4
        %s179 = scalar_lea.vmem [#allocation2], %s178
        %p180 = pneg %p55
        %p181 = pneg %p52
        %p182 = pneg %p76
        %p183 = pneg %p73
        %p184 = pneg %p104
        %p185 = pneg %p101
        %s186 = sand.u32 %s91, 1
        %s187 = scalar_lea.sflag [#allocation4], %s186
        %s188 = sand.u32 %s91, 1
        %s189 = smul.addr %s188, 4
        %s190 = scalar_lea.vmem [#allocation7], %s189
        %v192 = vld [vmem:[%s166] sm:$0xf]
        %v193 = vld [vmem:[#allocation5] sm:$0xf]
        %v194 = vld [vmem:[#allocation5 + $0x4] sm:$0xf]
        %v195 = vld [vmem:[#allocation5 + $0x8] sm:$0xf]
        %v196 = vld [vmem:[#allocation5 + $0xc] sm:$0xf]
        %v201 = vunpack.c.l.b16 %v193
        %v202 = vunpack.c.l.b16 %v194
        %v203 = vunpack.c.l.b16 %v195
        %v204 = vunpack.c.l.b16 %v196
        %v205 = vpack.c.b16 %v202, %v201
        %v206 = vpack.c.b16 %v204, %v203
        %vm209 = vcmask 261120
        %v211 = vsel %vm209, %v192, 0
        %213 = vmatprep.subr.bf16.mxu0 0
        %214 = vmatpush1.bf16.msra.mxu0 %v205
        %215 = vmatprep.subr.bf16.mxu0 0
        %216 = vmatpush1.bf16.msra.mxu0 %v206
        %217 = vmatprep.subr.bf16.mxu0 0
        %218 = vmatpush1.bf16.msra.mxu0 0
        %219 = vmatprep.subr.bf16.mxu0 0
        %220 = vmatpush1.bf16.msra.mxu0 0
        %221 = vmatprep.subr.bf16.mxu0 0
        %222 = vmatpush1.bf16.msra.mxu0 0
        %223 = vmatprep.subr.bf16.mxu0 0
        %224 = vmatpush1.bf16.msra.mxu0 0
        %225 = vmatprep.subr.bf16.mxu0 0
        %226 = vmatpush1.bf16.msra.mxu0 0
        %227 = vmatprep.subr.bf16.mxu0 0
        %228 = vmatpush1.bf16.msra.mxu0 0
        %229 = vmatprep.subr.bf16.mxu0 0
        %230 = vmatpush1.bf16.msra.mxu0 0
        %231 = vmatprep.subr.bf16.mxu0 0
        %232 = vmatpush1.bf16.msra.mxu0 0
        %233 = vmatprep.subr.bf16.mxu0 0
        %234 = vmatpush1.bf16.msra.mxu0 0
        %235 = vmatprep.subr.bf16.mxu0 0
        %236 = vmatpush1.bf16.msra.mxu0 0
        %237 = vmatprep.subr.bf16.mxu0 0
        %238 = vmatpush1.bf16.msra.mxu0 0
        %239 = vmatprep.subr.bf16.mxu0 0
        %240 = vmatpush1.bf16.msra.mxu0 0
        %241 = vmatprep.subr.bf16.mxu0 0
        %242 = vmatpush1.bf16.msra.mxu0 0
        %243 = vmatprep.subr.bf16.mxu0 0
        %244 = vmatpush1.bf16.msra.mxu0 0
        %245 = vmatprep.mubr.bf16.mxu0 0
        %246 = vmatmul.mubr.bf16.gmra.mrb[0].mxu0 %v211
        %v247 = vpop.f32.mrb[0].mxu0
        %v248 = vadd.f32 0.0, %v247
        %v249 = vpop.f32.mrb[0].mxu0
        %v250 = vpop.f32.mrb[0].mxu0
        %v251 = vpop.f32.mrb[0].mxu0
        %252 = vdwg.mxu0
        %v253 = vpack.c.bf16 %v248, %v248
        %vm254 = vcmask 781312
        %255 = vst.msk [vmem:[%s190] sm:$0xf] %vm254, %v253
        %s256 = sand.u32 %s91, 1
        %s257 = scalar_lea.sflag [#allocation4], %s256
        %s258 = sand.u32 %s91, 1
        %s259 = smul.addr %s258, 4
        %s260 = scalar_lea.vmem [#allocation7], %s259
        // Predicated region
        $region37: #{multi_head_attention.3} parent=27 // pred_check
          %p261 = pneg %p101
        $region38: #{multi_head_attention.3} parent=27 // pred_check_branch
          %263 = sbr.rel (%p261) target = $region40
        $region39: #{multi_head_attention.3} parent=27 // pred_region
          %s265 = ssub.s32 64, 64
          %266 = vsyncadd %s257, %s265
          %s267 = sadd.s32 %s25, %s24
          %s268 = smul.addr %s267, 64
          %s269 = scalar_lea.hbm %s2, %s268
          %s271 = sshll.u32 %s260, 4
          %s272 = int_to_ptr.vmem [resolvable:$true] %s271
          %274 = dma.vmem_to_hbm [thread:$0]  %s272, 64, %s269, %s257
        $region40: #{multi_head_attention.3} parent=27 // pred_fallthru
          _
      $region28: #{multi_head_attention.3} parent=5 // pred_fallthru
        _
      %p275 = scmp.le.s32.totalorder 2, %s15
      // Predicated region
      $region41: #{multi_head_attention.3} parent=5 // pred_check
        %p276 = pneg %p275
      $region42: #{multi_head_attention.3} parent=5 // pred_check_branch
        %278 = sbr.rel (%p276) target = $region44
      $region43: #{multi_head_attention.3} parent=5 // pred_region
        %s279 = ssub.s32 %s15, 2
        // Predicated region
        $region45: #{multi_head_attention.3} parent=43 // pred_check
          %p280 = pneg %p107
        $region46: #{multi_head_attention.3} parent=43 // pred_check_branch
          %282 = sbr.rel (%p280) target = $region48
        $region47: #{multi_head_attention.3} parent=43 // pred_region
          %s283 = sand.u32 %s92, 1
          %s284 = scalar_lea.sflag [#allocation4], %s283
          %s285 = sand.u32 %s92, 1
          %s286 = smul.addr %s285, 4
          %s287 = scalar_lea.vmem [#allocation7], %s286
          %288 = dma.done %s284, 64
        $region48: #{multi_head_attention.3} parent=43 // pred_fallthru
          _
      $region44: #{multi_head_attention.3} parent=5 // pred_fallthru
        _
    $region6: #{multi_head_attention.3} parent=1 // loop_footer
      %s19 = sadd.s32 1, %s15
    $region7: #{multi_head_attention.3} parent=1 // loop_footer_branch
      %14 = sbr.rel target = $region3
    $region8: #{multi_head_attention.3} parent=1 // loop_exit
      _
    %289 = vsyncpa [#allocation3], 1
    %s290 = scalar_lea.sflag [#allocation3], 1
    %291 = vsyncpa %s290, 1
    %292 = vsyncpa [#allocation6], 1
    %293 = vsyncpa [#allocation4], 1
    %s294 = scalar_lea.sflag [#allocation4], 1
    %295 = vsyncpa %s294, 1

// kernel: multi_head_attention.4
$region0: #{multi_head_attention.4}
  #allocation0 [shape = 'u32[]', space=smem, size = 0x4, offset = 0x4, fixed_abs, tag = 'smem constant byte address 0x4 - core index']
  #allocation1 [shape = 'u32[144,128]{1,0:T(1,128)}', space=vmem, size = 0x12000, scoped, tag = 'internal scratch']
  #allocation2 [shape = 'f32[8,1]{1,0:T(8,128)}', space=vmem, size = 0x1000, scoped, tag = 'scratch operand']
  #allocation3 [shape = 'f32[8,1]{1,0:T(8,128)}', space=vmem, size = 0x1000, scoped, tag = 'scratch operand']
  #allocation4 [shape = 'f32[8,8]{1,0:T(8,128)}', space=vmem, size = 0x1000, scoped, tag = 'scratch operand']
  %s0 = inlined_call_operand.hbm [shape: bf16[2,4,8,8], index: 0, kind: input, shape index: {}]
  %s1 = inlined_call_operand.hbm [shape: bf16[2,4,8,8], index: 1, kind: input, shape index: {}]
  %s2 = inlined_call_operand.hbm [shape: bf16[2,4,8,8], index: 2, kind: input, shape index: {}]
  %s3 = inlined_call_operand.hbm [shape: bf16[2,4,8,8], index: 3, kind: output, shape index: {}]
  %s4 = sld [smem:[#allocation0]]
  $region69: #{multi_head_attention.4} parent=0
    _
  %s6 = ssub.s32 1, %s4
  %s7 = scalar_select 0, %s6, %s4
  $region1: #{multi_head_attention.4} parent=0
    #allocation5 [shape = 'u8[4096]{0}', space=vmem, size = 0x1000, scoped, tag = 'input window, operand 0']
    #allocation6 [shape = 's32[2]{0}', space=sflag, size = 0x8, scoped, tag = 'scoped memory for multi_head_attention.4']
    #allocation7 [shape = 's32[2]{0}', space=sflag, size = 0x8, scoped, tag = 'scoped memory for multi_head_attention.4']
    #allocation8 [shape = 'u8[4096]{0}', space=vmem, size = 0x1000, scoped, tag = 'input window, operand 1']
    #allocation9 [shape = 's32[2]{0}', space=sflag, size = 0x8, scoped, tag = 'scoped memory for multi_head_attention.4']
    #allocation10 [shape = 'u8[4096]{0}', space=vmem, size = 0x1000, scoped, tag = 'input window, operand 2']
    #allocation11 [shape = 'u8[4096]{0}', space=vmem, size = 0x1000, scoped, tag = 'output window, operand 0']
    %8 = vsyncpa [#allocation6], 0
    %s9 = scalar_lea.sflag [#allocation6], 1
    %10 = vsyncpa %s9, 0
    %11 = vsyncpa [#allocation9], 0
    %s12 = scalar_lea.sflag [#allocation9], 1
    %13 = vsyncpa %s12, 0
    %14 = vsyncpa [#allocation7], 0
    %s15 = scalar_lea.sflag [#allocation7], 1
    %16 = vsyncpa %s15, 0
    loop: start=0, step=1, limit=10
    $region2: #{multi_head_attention.4} parent=1 // loop_pre_header
      _
    $region3: #{multi_head_attention.4} parent=1 // loop_header
      %s18 = sphi 0, %s22
      %p19 = scmp.ge.s32.totalorder %s18, 10
      %s25 = sphi 0, %s51
      %s26 = sphi 0, %s47
      %s27 = sphi 0, %s43
      %s28 = sphi 0, %s39
      %s29 = sphi 0, %s25
      %s30 = sphi 0, %s26
      %s31 = sphi 0, %s27
      %s32 = sphi 0, %s28
      %s33 = sphi 0, %s29
      %s34 = sphi 0, %s30
      %s35 = sphi 0, %s31
      %s36 = sphi 0, %s32
      %s58 = sphi 0, %s60
      %s61 = sphi 0, %s58
      %s62 = sphi 0, %s61
      %s78 = sphi 0, %s62
      %s88 = sphi 0, %s90
      %s91 = sphi 0, %s88
      %s92 = sphi 0, %s91
      %s108 = sphi 0, %s92
      %s118 = sphi 0, %s120
      %s121 = sphi 0, %s118
      %s122 = sphi 0, %s121
      %s138 = sphi 0, %s122
      %s148 = sphi 0, %s150
      %s151 = sphi 0, %s148
      %s152 = sphi 0, %s151
      %s168 = sphi 0, %s152
    $region4: #{multi_head_attention.4} parent=1 // loop_header_branch
      %21 = sbr.rel (%p19) target = $region8
    $region5: #{multi_head_attention.4} parent=1 // loop_body
      %s23 = ssub.s32 %s18, 1
      %s24 = ssub.s32 %s18, 2
      %s37 = sadd.s32 1, %s28
      %p38 = scmp.ge.s32.totalorder %s37, 1
      %s39 = scalar_select %p38, 0, %s37
      %s40 = sadd.s32 1, %s27
      %s41 = scalar_select %p38, %s40, %s27
      %p42 = scmp.ge.s32.totalorder %s41, 1
      %s43 = scalar_select %p42, 0, %s41
      %s44 = sadd.s32 1, %s26
      %s45 = scalar_select %p42, %s44, %s26
      %p46 = scmp.ge.s32.totalorder %s45, 4
      %s47 = scalar_select %p46, 0, %s45
      %s48 = sadd.s32 1, %s25
      %s49 = scalar_select %p46, %s48, %s25
      %p50 = scmp.ge.s32.totalorder %s49, 2
      %s51 = scalar_select %p50, 0, %s49
      %s52 = ssub.s32 %s25, %s51
      %s53 = ssub.s32 %s26, %s47
      %s54 = sor.u32 %s52, %s53
      %s55 = ssub.s32 %s27, %s43
      %s56 = sor.u32 %s54, %s55
      %p57 = scmp.eq.s32.totalorder %s56, 0
      %s59 = sadd.s32 %s58, 1
      %s60 = scalar_select %p57, %s58, %s59
      %p63 = pneg %p57
      %p64 = scmp.eq.s32.totalorder %s18, 7
      %p65 = por %p63, %p64
      %p66 = scmp.ne.s32.totalorder %s58, %s61
      %p67 = scmp.eq.s32.totalorder %s18, 0
      %p68 = por %p66, %p67
      %p69 = scmp.ne.s32.totalorder %s58, %s61
      %p70 = scmp.eq.s32.totalorder %s23, 7
      %p71 = por %p69, %p70
      %p72 = scmp.ne.s32.totalorder %s61, %s62
      %p73 = scmp.eq.s32.totalorder %s23, 0
      %p74 = por %p72, %p73
      %p75 = scmp.ne.s32.totalorder %s61, %s62
      %p76 = scmp.eq.s32.totalorder %s24, 7
      %p77 = por %p75, %p76
      %p79 = scmp.ne.s32.totalorder %s62, %s78
      %p80 = scmp.eq.s32.totalorder %s24, 0
      %p81 = por %p79, %p80
      %s82 = ssub.s32 %s25, %s51
      %s83 = ssub.s32 %s26, %s47
      %s84 = sor.u32 %s82, %s83
      %s85 = ssub.s32 %s28, %s39
      %s86 = sor.u32 %s84, %s85
      %p87 = scmp.eq.s32.totalorder %s86, 0
      %s89 = sadd.s32 %s88, 1
      %s90 = scalar_select %p87, %s88, %s89
      %p93 = pneg %p87
      %p94 = scmp.eq.s32.totalorder %s18, 7
      %p95 = por %p93, %p94
      %p96 = scmp.ne.s32.totalorder %s88, %s91
      %p97 = scmp.eq.s32.totalorder %s18, 0
      %p98 = por %p96, %p97
      %p99 = scmp.ne.s32.totalorder %s88, %s91
      %p100 = scmp.eq.s32.totalorder %s23, 7
      %p101 = por %p99, %p100
      %p102 = scmp.ne.s32.totalorder %s91, %s92
      %p103 = scmp.eq.s32.totalorder %s23, 0
      %p104 = por %p102, %p103
      %p105 = scmp.ne.s32.totalorder %s91, %s92
      %p106 = scmp.eq.s32.totalorder %s24, 7
      %p107 = por %p105, %p106
      %p109 = scmp.ne.s32.totalorder %s92, %s108
      %p110 = scmp.eq.s32.totalorder %s24, 0
      %p111 = por %p109, %p110
      %s112 = ssub.s32 %s25, %s51
      %s113 = ssub.s32 %s26, %s47
      %s114 = sor.u32 %s112, %s113
      %s115 = ssub.s32 %s28, %s39
      %s116 = sor.u32 %s114, %s115
      %p117 = scmp.eq.s32.totalorder %s116, 0
      %s119 = sadd.s32 %s118, 1
      %s120 = scalar_select %p117, %s118, %s119
      %p123 = pneg %p117
      %p124 = scmp.eq.s32.totalorder %s18, 7
      %p125 = por %p123, %p124
      %p126 = scmp.ne.s32.totalorder %s118, %s121
      %p127 = scmp.eq.s32.totalorder %s18, 0
      %p128 = por %p126, %p127
      %p129 = scmp.ne.s32.totalorder %s118, %s121
      %p130 = scmp.eq.s32.totalorder %s23, 7
      %p131 = por %p129, %p130
      %p132 = scmp.ne.s32.totalorder %s121, %s122
      %p133 = scmp.eq.s32.totalorder %s23, 0
      %p134 = por %p132, %p133
      %p135 = scmp.ne.s32.totalorder %s121, %s122
      %p136 = scmp.eq.s32.totalorder %s24, 7
      %p137 = por %p135, %p136
      %p139 = scmp.ne.s32.totalorder %s122, %s138
      %p140 = scmp.eq.s32.totalorder %s24, 0
      %p141 = por %p139, %p140
      %s142 = ssub.s32 %s25, %s51
      %s143 = ssub.s32 %s26, %s47
      %s144 = sor.u32 %s142, %s143
      %s145 = ssub.s32 %s27, %s43
      %s146 = sor.u32 %s144, %s145
      %p147 = scmp.eq.s32.totalorder %s146, 0
      %s149 = sadd.s32 %s148, 1
      %s150 = scalar_select %p147, %s148, %s149
      %p153 = pneg %p147
      %p154 = scmp.eq.s32.totalorder %s18, 7
      %p155 = por %p153, %p154
      %p156 = scmp.ne.s32.totalorder %s148, %s151
      %p157 = scmp.eq.s32.totalorder %s18, 0
      %p158 = por %p156, %p157
      %p159 = scmp.ne.s32.totalorder %s148, %s151
      %p160 = scmp.eq.s32.totalorder %s23, 7
      %p161 = por %p159, %p160
      %p162 = scmp.ne.s32.totalorder %s151, %s152
      %p163 = scmp.eq.s32.totalorder %s23, 0
      %p164 = por %p162, %p163
      %p165 = scmp.ne.s32.totalorder %s151, %s152
      %p166 = scmp.eq.s32.totalorder %s24, 7
      %p167 = por %p165, %p166
      %p169 = scmp.ne.s32.totalorder %s152, %s168
      %p170 = scmp.eq.s32.totalorder %s24, 0
      %p171 = por %p169, %p170
      %p172 = scmp.le.s32.totalorder 1, %s18
      %p173 = scmp.lt.s32.totalorder %s18, 9
      %p174 = pnand %p172, %p173
      %p175 = pneg %p174
      // Predicated region
      $region9: #{multi_head_attention.4} parent=5 // pred_check
        _
      $region10: #{multi_head_attention.4} parent=5 // pred_check_branch
        %177 = sbr.rel (%p174) target = $region12
      $region11: #{multi_head_attention.4} parent=5 // pred_region
        %s178 = ssub.s32 %s18, 1
      $region12: #{multi_head_attention.4} parent=5 // pred_fallthru
        _
      %p179 = scmp.lt.s32.totalorder %s18, 8
      // Predicated region
      $region13: #{multi_head_attention.4} parent=5 // pred_check
        %p180 = pneg %p179
      $region14: #{multi_head_attention.4} parent=5 // pred_check_branch
        %182 = sbr.rel (%p180) target = $region16
      $region15: #{multi_head_attention.4} parent=5 // pred_region
        // Predicated region
        $region17: #{multi_head_attention.4} parent=15 // pred_check
          %p183 = pneg %p68
        $region18: #{multi_head_attention.4} parent=15 // pred_check_branch
          %185 = sbr.rel (%p183) target = $region20
        $region19: #{multi_head_attention.4} parent=15 // pred_region
          %s186 = sand.u32 %s58, 1
          %s187 = scalar_lea.sflag [#allocation6], %s186
          %s188 = sand.u32 %s58, 1
          %s189 = smul.addr %s188, 4
          %s190 = scalar_lea.vmem [#allocation5], %s189
          %s192 = ssub.s32 64, 64
          %193 = vsyncadd %s187, %s192
          %s194 = sadd.s32 %s27, %s26
          %s195 = smul.addr %s25, 4
          %s196 = sadd.s32 %s194, %s195
          %s197 = smul.addr %s196, 64
          %s198 = scalar_lea.hbm %s0, %s197
          %s200 = sshll.u32 %s190, 4
          %s201 = int_to_ptr.vmem [resolvable:$true] %s200
          %203 = dma.hbm_to_vmem [thread:$0]  %s198, 64, %s201, %s187
        $region20: #{multi_head_attention.4} parent=15 // pred_fallthru
          _
        // Predicated region
        $region21: #{multi_head_attention.4} parent=15 // pred_check
          %p204 = pneg %p98
        $region22: #{multi_head_attention.4} parent=15 // pred_check_branch
          %206 = sbr.rel (%p204) target = $region24
        $region23: #{multi_head_attention.4} parent=15 // pred_region
          %s207 = sand.u32 %s18, 1
          %s208 = scalar_lea.sflag [#allocation9], %s207
          %s209 = sand.u32 %s88, 1
          %s210 = smul.addr %s209, 4
          %s211 = scalar_lea.vmem [#allocation8], %s210
          %s213 = ssub.s32 64, 64
          %214 = vsyncadd %s208, %s213
          %s215 = sadd.s32 %s28, %s26
          %s216 = smul.addr %s25, 4
          %s217 = sadd.s32 %s215, %s216
          %s218 = smul.addr %s217, 64
          %s219 = scalar_lea.hbm %s1, %s218
          %s221 = sshll.u32 %s211, 4
          %s222 = int_to_ptr.vmem [resolvable:$true] %s221
          %224 = dma.hbm_to_vmem [thread:$0]  %s219, 64, %s222, %s208
        $region24: #{multi_head_attention.4} parent=15 // pred_fallthru
          _
        // Predicated region
        $region25: #{multi_head_attention.4} parent=15 // pred_check
          %p225 = pneg %p128
        $region26: #{multi_head_attention.4} parent=15 // pred_check_branch
          %227 = sbr.rel (%p225) target = $region28
        $region27: #{multi_head_attention.4} parent=15 // pred_region
          %s228 = sand.u32 %s18, 1
          %s229 = scalar_lea.sflag [#allocation9], %s228
          %s230 = sand.u32 %s118, 1
          %s231 = smul.addr %s230, 4
          %s232 = scalar_lea.vmem [#allocation10], %s231
          %s234 = ssub.s32 64, 64
          %235 = vsyncadd %s229, %s234
          %s236 = sadd.s32 %s28, %s26
          %s237 = smul.addr %s25, 4
          %s238 = sadd.s32 %s236, %s237
          %s239 = smul.addr %s238, 64
          %s240 = scalar_lea.hbm %s2, %s239
          %s242 = sshll.u32 %s232, 4
          %s243 = int_to_ptr.vmem [resolvable:$true] %s242
          %245 = dma.hbm_to_vmem [thread:$0]  %s240, 64, %s243, %s229
        $region28: #{multi_head_attention.4} parent=15 // pred_fallthru
          _
      $region16: #{multi_head_attention.4} parent=5 // pred_fallthru
        _
      %p246 = scmp.le.s32.totalorder 1, %s18
      %p247 = scmp.lt.s32.totalorder %s18, 9
      %p248 = pnand %p246, %p247
      %p249 = pneg %p248
      // Predicated region
      $region29: #{multi_head_attention.4} parent=5 // pred_check
        _
      $region30: #{multi_head_attention.4} parent=5 // pred_check_branch
        %251 = sbr.rel (%p248) target = $region32
      $region31: #{multi_head_attention.4} parent=5 // pred_region
        %s252 = ssub.s32 %s18, 1
        %s253 = sand.u32 %s61, 1
        %s254 = scalar_lea.sflag [#allocation6], %s253
        %s255 = sand.u32 %s61, 1
        %s256 = smul.addr %s255, 4
        %s257 = scalar_lea.vmem [#allocation5], %s256
        // Predicated region
        $region33: #{multi_head_attention.4} parent=31 // pred_check
          %p258 = pneg %p74
        $region34: #{multi_head_attention.4} parent=31 // pred_check_branch
          %260 = sbr.rel (%p258) target = $region36
        $region35: #{multi_head_attention.4} parent=31 // pred_region
          %261 = dma.done %s254, 64
        $region36: #{multi_head_attention.4} parent=31 // pred_fallthru
          _
        %s262 = sand.u32 %s23, 1
        %s263 = scalar_lea.sflag [#allocation9], %s262
        %s264 = sand.u32 %s91, 1
        %s265 = smul.addr %s264, 4
        %s266 = scalar_lea.vmem [#allocation8], %s265
        // Predicated region
        $region37: #{multi_head_attention.4} parent=31 // pred_check
          %p267 = pneg %p104
        $region38: #{multi_head_attention.4} parent=31 // pred_check_branch
          %269 = sbr.rel (%p267) target = $region40
        $region39: #{multi_head_attention.4} parent=31 // pred_region
          %270 = dma.done %s263, 64
        $region40: #{multi_head_attention.4} parent=31 // pred_fallthru
          _
        %s271 = sand.u32 %s23, 1
        %s272 = scalar_lea.sflag [#allocation9], %s271
        %s273 = sand.u32 %s121, 1
        %s274 = smul.addr %s273, 4
        %s275 = scalar_lea.vmem [#allocation10], %s274
        // Predicated region
        $region41: #{multi_head_attention.4} parent=31 // pred_check
          %p276 = pneg %p134
        $region42: #{multi_head_attention.4} parent=31 // pred_check_branch
          %278 = sbr.rel (%p276) target = $region44
        $region43: #{multi_head_attention.4} parent=31 // pred_region
          %279 = dma.done %s272, 64
        $region44: #{multi_head_attention.4} parent=31 // pred_fallthru
          _
        %s280 = sand.u32 %s61, 1
        %s281 = scalar_lea.sflag [#allocation6], %s280
        %s282 = sand.u32 %s61, 1
        %s283 = smul.addr %s282, 4
        %s284 = scalar_lea.vmem [#allocation5], %s283
        %p285 = pneg %p74
        %p286 = pneg %p71
        %s287 = sand.u32 %s23, 1
        %s288 = scalar_lea.sflag [#allocation9], %s287
        %s289 = sand.u32 %s91, 1
        %s290 = smul.addr %s289, 4
        %s291 = scalar_lea.vmem [#allocation8], %s290
        %p292 = pneg %p104
        %p293 = pneg %p101
        %s294 = sand.u32 %s23, 1
        %s295 = scalar_lea.sflag [#allocation9], %s294
        %s296 = sand.u32 %s121, 1
        %s297 = smul.addr %s296, 4
        %s298 = scalar_lea.vmem [#allocation10], %s297
        %p299 = pneg %p134
        %p300 = pneg %p131
        %p301 = pneg %p164
        %p302 = pneg %p161
        %s303 = sand.u32 %s151, 1
        %s304 = scalar_lea.sflag [#allocation7], %s303
        %s305 = sand.u32 %s151, 1
        %s306 = smul.addr %s305, 4
        %s307 = scalar_lea.vmem [#allocation11], %s306
        %p309 = scmp.eq.s32.totalorder %s32, 0
        // Predicated region
        $region45: #{multi_head_attention.4} parent=31 // pred_check
          %p310 = pneg %p309
        $region46: #{multi_head_attention.4} parent=31 // pred_check_branch
          %312 = sbr.rel (%p310) target = $region48
        $region47: #{multi_head_attention.4} parent=31 // pred_region
          %vm313 = vcmask 7168
          %314 = vst.msk [vmem:[#allocation2] sm:$0xff] %vm313, -2.3819763e+38
          %315 = vst.msk [vmem:[#allocation3] sm:$0xff] %vm313, 0.0
          %vm316 = vcmask 64512
          %317 = vst.msk [vmem:[#allocation4] sm:$0xff] %vm316, 0.0
        $region48: #{multi_head_attention.4} parent=31 // pred_fallthru
          _
        %s318 = smul.u32 %s32, 8
        %s319 = smul.u32 %s31, 8
        %s320 = sadd.s32 %s319, 7
        %p321 = scmp.le.s32.totalorder %s318, %s320
        // Predicated region
        $region49: #{multi_head_attention.4} parent=31 // pred_check
          %p322 = pneg %p321
        $region50: #{multi_head_attention.4} parent=31 // pred_check_branch
          %324 = sbr.rel (%p322) target = $region52
        $region51: #{multi_head_attention.4} parent=31 // pred_region
          %v325 = vld [vmem:[%s257] sm:$0xf]
          %v326 = vld [vmem:[%s266] sm:$0xf]
          %v327 = vld [vmem:[%s275] sm:$0xf]
          %vm328 = vcmask 64512
          %v330 = vsel %vm328, %v325, 0
          %v333 = vsel %vm328, %v326, 0
          %335 = vmatprep.subr.bf16.mxu0 0
          %336 = vmatpush1.bf16.xpose.msra.mxu0 %v333
          %337 = vmatprep.subr.bf16.mxu0 0
          %338 = vmatpush1.bf16.xpose.msra.mxu0 0
          %339 = vmatprep.subr.bf16.mxu0 0
          %340 = vmatpush1.bf16.xpose.msra.mxu0 0
          %341 = vmatprep.subr.bf16.mxu0 0
          %342 = vmatpush1.bf16.xpose.msra.mxu0 0
          %343 = vmatprep.subr.bf16.mxu0 0
          %344 = vmatpush1.bf16.xpose.msra.mxu0 0
          %345 = vmatprep.subr.bf16.mxu0 0
          %346 = vmatpush1.bf16.xpose.msra.mxu0 0
          %347 = vmatprep.subr.bf16.mxu0 0
          %348 = vmatpush1.bf16.xpose.msra.mxu0 0
          %349 = vmatprep.subr.bf16.mxu0 0
          %350 = vmatpush1.bf16.xpose.msra.mxu0 0
          %351 = vmatprep.subr.bf16.mxu0 0
          %352 = vmatpush1.bf16.xpose.msra.mxu0 0
          %353 = vmatprep.subr.bf16.mxu0 0
          %354 = vmatpush1.bf16.xpose.msra.mxu0 0
          %355 = vmatprep.subr.bf16.mxu0 0
          %356 = vmatpush1.bf16.xpose.msra.mxu0 0
          %357 = vmatprep.subr.bf16.mxu0 0
          %358 = vmatpush1.bf16.xpose.msra.mxu0 0
          %359 = vmatprep.subr.bf16.mxu0 0
          %360 = vmatpush1.bf16.xpose.msra.mxu0 0
          %361 = vmatprep.subr.bf16.mxu0 0
          %362 = vmatpush1.bf16.xpose.msra.mxu0 0
          %363 = vmatprep.subr.bf16.mxu0 0
          %364 = vmatpush1.bf16.xpose.msra.mxu0 0
          %365 = vmatprep.subr.bf16.mxu0 0
          %366 = vmatpush1.bf16.xpose.msra.mxu0 0
          %367 = vmatprep.mubr.bf16.mxu0 0
          %368 = vmatmul.mubr.bf16.gmra.mrb[0].mxu0 %v330
          %v369 = vpop.f32.mrb[0].mxu0
          %v370 = vadd.f32 0.0, %v369
          %v371 = vpop.f32.mrb[0].mxu0
          %v372 = vpop.f32.mrb[0].mxu0
          %v373 = vpop.f32.mrb[0].mxu0
          %374 = vdwg.mxu0
          %v375 = vlaneseq
          %v376 = vshrl.u32 %v375, 7
          %v377 = vstv %s319
          %v378 = vadd.s32 %v377, %v376
          %v379 = vlaneseq
          %v380 = vand.u32 %v379, 127
          %v381 = vstv %s318
          %v382 = vadd.s32 %v381, %v380
          %vm383 = vcmp.gt.s32.totalorder %v382, %v378
          %v384 = vsel %vm383, -2.3819763e+38, %v370
          %v385 = vld [vmem:[#allocation2] sm:$0xff]
          %v386 = vsel %vm328, %v384, -inf
          %387 = vmax.xlane.f32.xlu0 %v386
          %v388 = vpop.xlane.xlu0 %387
          %v389 = vmax.f32 %v385, %v388
          %v390 = vsub.f32 %v385, %v389
          %v391 = vmul.f32 %v390, 1.442695
          %v392 = vpow.pop %v391
          %394 = vset.pattern.permute.xlu0 0
          %395 = vperm.xlu0 %394, %v389
          %v396 = vpop.permute.xlu0 %395
          %v398 = vsub.f32 %v384, %v396
          %v399 = vmul.f32 %v398, 1.442695
          %v400 = vpow.pop %v399
          %v401 = vld [vmem:[#allocation3] sm:$0xff]
          %v402 = vmul.f32 %v392, %v401
          %v403 = vsel %vm328, %v400, 0.0
          %404 = vadd.xlane.f32.xlu0 %v403
          %v405 = vpop.xlane.xlu0 %404
          %v406 = vadd.f32 %v402, %v405
          %vm407 = vcmask 7168
          %408 = vst.msk [vmem:[#allocation3] sm:$0xff] %vm407, %v406
          %v409 = vld [vmem:[#allocation4] sm:$0xff]
          %411 = vset.pattern.permute.xlu0 0
          %412 = vperm.xlu0 %411, %v392
          %v413 = vpop.permute.xlu0 %412
          %v415 = vmul.f32 %v413, %v409
          %v416 = vpack.c.bf16 %v400, %v400
          %v418 = vsel %vm328, %v416, 0
          %vm420 = vcmask 1043456
          %v422 = vsel %vm420, %v327, 0
          %424 = vmatprep.subr.bf16.mxu0 0
          %425 = vmatpush1.bf16.msra.mxu0 %v422
          %426 = vmatprep.subr.bf16.mxu0 0
          %427 = vmatpush1.bf16.msra.mxu0 0
          %428 = vmatprep.subr.bf16.mxu0 0
          %429 = vmatpush1.bf16.msra.mxu0 0
          %430 = vmatprep.subr.bf16.mxu0 0
          %431 = vmatpush1.bf16.msra.mxu0 0
          %432 = vmatprep.subr.bf16.mxu0 0
          %433 = vmatpush1.bf16.msra.mxu0 0
          %434 = vmatprep.subr.bf16.mxu0 0
          %435 = vmatpush1.bf16.msra.mxu0 0
          %436 = vmatprep.subr.bf16.mxu0 0
          %437 = vmatpush1.bf16.msra.mxu0 0
          %438 = vmatprep.subr.bf16.mxu0 0
          %439 = vmatpush1.bf16.msra.mxu0 0
          %440 = vmatprep.subr.bf16.mxu0 0
          %441 = vmatpush1.bf16.msra.mxu0 0
          %442 = vmatprep.subr.bf16.mxu0 0
          %443 = vmatpush1.bf16.msra.mxu0 0
          %444 = vmatprep.subr.bf16.mxu0 0
          %445 = vmatpush1.bf16.msra.mxu0 0
          %446 = vmatprep.subr.bf16.mxu0 0
          %447 = vmatpush1.bf16.msra.mxu0 0
          %448 = vmatprep.subr.bf16.mxu0 0
          %449 = vmatpush1.bf16.msra.mxu0 0
          %450 = vmatprep.subr.bf16.mxu0 0
          %451 = vmatpush1.bf16.msra.mxu0 0
          %452 = vmatprep.subr.bf16.mxu0 0
          %453 = vmatpush1.bf16.msra.mxu0 0
          %454 = vmatprep.subr.bf16.mxu0 0
          %455 = vmatpush1.bf16.msra.mxu0 0
          %456 = vmatprep.mubr.bf16.mxu0 0
          %457 = vmatmul.mubr.bf16.gmra.mrb[0].mxu0 %v418
          %v458 = vpop.f32.mrb[0].mxu0
          %v459 = vadd.f32 0.0, %v458
          %v460 = vpop.f32.mrb[0].mxu0
          %v461 = vpop.f32.mrb[0].mxu0
          %v462 = vpop.f32.mrb[0].mxu0
          %463 = vdwg.mxu0
          %v464 = vadd.f32 %v415, %v459
          %465 = vst.msk [vmem:[#allocation4] sm:$0xff] %vm328, %v464
          %466 = vst.msk [vmem:[#allocation2] sm:$0xff] %vm407, %v389
        $region52: #{multi_head_attention.4} parent=31 // pred_fallthru
          _
        // Predicated region
        $region53: #{multi_head_attention.4} parent=31 // pred_check
          %p467 = pneg %p309
        $region54: #{multi_head_attention.4} parent=31 // pred_check_branch
          %469 = sbr.rel (%p467) target = $region56
        $region55: #{multi_head_attention.4} parent=31 // pred_region
          %v470 = vld [vmem:[#allocation3] sm:$0xff]
          %v471 = vrcp.pop %v470
          %v472 = vld [vmem:[#allocation4] sm:$0xff]
          %474 = vset.pattern.permute.xlu0 0
          %475 = vperm.xlu0 %474, %v471
          %v476 = vpop.permute.xlu0 %475
          %v478 = vmul.f32 %v472, %v476
          %v479 = vpack.c.bf16 %v478, %v478
          %vm480 = vcmask 60416
          %481 = vst.msk [vmem:[%s307] sm:$0xf] %vm480, %v479
        $region56: #{multi_head_attention.4} parent=31 // pred_fallthru
          _
        %s482 = sand.u32 %s151, 1
        %s483 = scalar_lea.sflag [#allocation7], %s482
        %s484 = sand.u32 %s151, 1
        %s485 = smul.addr %s484, 4
        %s486 = scalar_lea.vmem [#allocation11], %s485
        // Predicated region
        $region57: #{multi_head_attention.4} parent=31 // pred_check
          %p487 = pneg %p161
        $region58: #{multi_head_attention.4} parent=31 // pred_check_branch
          %489 = sbr.rel (%p487) target = $region60
        $region59: #{multi_head_attention.4} parent=31 // pred_region
          %s491 = ssub.s32 64, 64
          %492 = vsyncadd %s483, %s491
          %s493 = sadd.s32 %s31, %s30
          %s494 = smul.addr %s29, 4
          %s495 = sadd.s32 %s493, %s494
          %s496 = smul.addr %s495, 64
          %s497 = scalar_lea.hbm %s3, %s496
          %s499 = sshll.u32 %s486, 4
          %s500 = int_to_ptr.vmem [resolvable:$true] %s499
          %502 = dma.vmem_to_hbm [thread:$0]  %s500, 64, %s497, %s483
        $region60: #{multi_head_attention.4} parent=31 // pred_fallthru
          _
      $region32: #{multi_head_attention.4} parent=5 // pred_fallthru
        _
      %p503 = scmp.le.s32.totalorder 2, %s18
      // Predicated region
      $region61: #{multi_head_attention.4} parent=5 // pred_check
        %p504 = pneg %p503
      $region62: #{multi_head_attention.4} parent=5 // pred_check_branch
        %506 = sbr.rel (%p504) target = $region64
      $region63: #{multi_head_attention.4} parent=5 // pred_region
        %s507 = ssub.s32 %s18, 2
        // Predicated region
        $region65: #{multi_head_attention.4} parent=63 // pred_check
          %p508 = pneg %p167
        $region66: #{multi_head_attention.4} parent=63 // pred_check_branch
          %510 = sbr.rel (%p508) target = $region68
        $region67: #{multi_head_attention.4} parent=63 // pred_region
          %s511 = sand.u32 %s152, 1
          %s512 = scalar_lea.sflag [#allocation7], %s511
          %s513 = sand.u32 %s152, 1
          %s514 = smul.addr %s513, 4
          %s515 = scalar_lea.vmem [#allocation11], %s514
          %516 = dma.done %s512, 64
        $region68: #{multi_head_attention.4} parent=63 // pred_fallthru
          _
      $region64: #{multi_head_attention.4} parent=5 // pred_fallthru
        _
    $region6: #{multi_head_attention.4} parent=1 // loop_footer
      %s22 = sadd.s32 1, %s18
    $region7: #{multi_head_attention.4} parent=1 // loop_footer_branch
      %17 = sbr.rel target = $region3
    $region8: #{multi_head_attention.4} parent=1 // loop_exit
      _
    %517 = vsyncpa [#allocation6], 1
    %s518 = scalar_lea.sflag [#allocation6], 1
    %519 = vsyncpa %s518, 1
    %520 = vsyncpa [#allocation9], 1
    %s521 = scalar_lea.sflag [#allocation9], 1
    %522 = vsyncpa %s521, 1
    %523 = vsyncpa [#allocation7], 1
    %s524 = scalar_lea.sflag [#allocation7], 1
    %525 = vsyncpa %s524, 1

// kernel: multi_head_attention.5
$region0: #{multi_head_attention.5}
  #allocation0 [shape = 'u32[]', space=smem, size = 0x4, offset = 0x4, fixed_abs, tag = 'smem constant byte address 0x4 - core index']
  #allocation1 [shape = 'u32[144,128]{1,0:T(1,128)}', space=vmem, size = 0x12000, scoped, tag = 'internal scratch']
  %s0 = inlined_call_operand.hbm [shape: bf16[2,8,32], index: 0, kind: input, shape index: {}]
  %s1 = inlined_call_operand.hbm [shape: bf16[32,32], index: 1, kind: input, shape index: {}]
  %s2 = inlined_call_operand.hbm [shape: f32[1,32], index: 2, kind: input, shape index: {}]
  %s3 = inlined_call_operand.hbm [shape: f32[2,8,32], index: 3, kind: output, shape index: {}]
  %s4 = sld [smem:[#allocation0]]
  $region57: #{multi_head_attention.5} parent=0
    _
  %s6 = ssub.s32 1, %s4
  %s7 = scalar_select 0, %s6, %s4
  $region1: #{multi_head_attention.5} parent=0
    #allocation2 [shape = 'u8[4096]{0}', space=vmem, size = 0x1000, scoped, tag = 'input window, operand 0']
    #allocation3 [shape = 's32[2]{0}', space=sflag, size = 0x8, scoped, tag = 'scoped memory for multi_head_attention.5']
    #allocation4 [shape = 's32[2]{0}', space=sflag, size = 0x8, scoped, tag = 'scoped memory for multi_head_attention.5']
    #allocation5 [shape = 'u8[8192]{0}', space=vmem, size = 0x2000, scoped, tag = 'input window, operand 1, single buffered']
    #allocation6 [shape = 's32[1]{0}', space=sflag, size = 0x4, scoped, tag = 'scoped memory for multi_head_attention.5']
    #allocation7 [shape = 'u8[512]{0}', space=vmem, size = 0x400, scoped, tag = 'input window, operand 2, single buffered']
    #allocation8 [shape = 'u8[8192]{0}', space=vmem, size = 0x2000, scoped, tag = 'output window, operand 0']
    %8 = vsyncpa [#allocation3], 0
    %s9 = scalar_lea.sflag [#allocation3], 1
    %10 = vsyncpa %s9, 0
    %11 = vsyncpa [#allocation6], 0
    %12 = vsyncpa [#allocation4], 0
    %s13 = scalar_lea.sflag [#allocation4], 1
    %14 = vsyncpa %s13, 0
    loop: start=0, step=1, limit=4
    $region2: #{multi_head_attention.5} parent=1 // loop_pre_header
      _
    $region3: #{multi_head_attention.5} parent=1 // loop_header
      %s16 = sphi 0, %s20
      %p17 = scmp.ge.s32.totalorder %s16, 4
      %s23 = sphi 0, %s35
      %s24 = sphi 0, %s31
      %s25 = sphi 0, %s23
      %s26 = sphi 0, %s24
      %s27 = sphi 0, %s25
      %s28 = sphi 0, %s26
      %s40 = sphi 0, %s42
      %s43 = sphi 0, %s40
      %s44 = sphi 0, %s43
      %s60 = sphi 0, %s44
      %s64 = sphi 0, %s64
      %s66 = sphi 0, %s64
      %s67 = sphi 0, %s66
      %s81 = sphi 0, %s67
      %s85 = sphi 0, %s85
      %s87 = sphi 0, %s85
      %s88 = sphi 0, %s87
      %s102 = sphi 0, %s88
      %s110 = sphi 0, %s112
      %s113 = sphi 0, %s110
      %s114 = sphi 0, %s113
      %s130 = sphi 0, %s114
    $region4: #{multi_head_attention.5} parent=1 // loop_header_branch
      %19 = sbr.rel (%p17) target = $region8
    $region5: #{multi_head_attention.5} parent=1 // loop_body
      %s21 = ssub.s32 %s16, 1
      %s22 = ssub.s32 %s16, 2
      %s29 = sadd.s32 1, %s24
      %p30 = scmp.ge.s32.totalorder %s29, 1
      %s31 = scalar_select %p30, 0, %s29
      %s32 = sadd.s32 1, %s23
      %s33 = scalar_select %p30, %s32, %s23
      %p34 = scmp.ge.s32.totalorder %s33, 2
      %s35 = scalar_select %p34, 0, %s33
      %s36 = ssub.s32 %s23, %s35
      %s37 = ssub.s32 %s24, %s31
      %s38 = sor.u32 %s36, %s37
      %p39 = scmp.eq.s32.totalorder %s38, 0
      %s41 = sadd.s32 %s40, 1
      %s42 = scalar_select %p39, %s40, %s41
      %p45 = pneg %p39
      %p46 = scmp.eq.s32.totalorder %s16, 1
      %p47 = por %p45, %p46
      %p48 = scmp.ne.s32.totalorder %s40, %s43
      %p49 = scmp.eq.s32.totalorder %s16, 0
      %p50 = por %p48, %p49
      %p51 = scmp.ne.s32.totalorder %s40, %s43
      %p52 = scmp.eq.s32.totalorder %s21, 1
      %p53 = por %p51, %p52
      %p54 = scmp.ne.s32.totalorder %s43, %s44
      %p55 = scmp.eq.s32.totalorder %s21, 0
      %p56 = por %p54, %p55
      %p57 = scmp.ne.s32.totalorder %s43, %s44
      %p58 = scmp.eq.s32.totalorder %s22, 1
      %p59 = por %p57, %p58
      %p61 = scmp.ne.s32.totalorder %s44, %s60
      %p62 = scmp.eq.s32.totalorder %s22, 0
      %p63 = por %p61, %p62
      %s65 = sadd.s32 %s64, 1
      %p68 = scmp.eq.s32.totalorder %s16, 1
      %p69 = scmp.ne.s32.totalorder %s64, %s66
      %p70 = scmp.eq.s32.totalorder %s16, 0
      %p71 = por %p69, %p70
      %p72 = scmp.ne.s32.totalorder %s64, %s66
      %p73 = scmp.eq.s32.totalorder %s21, 1
      %p74 = por %p72, %p73
      %p75 = scmp.ne.s32.totalorder %s66, %s67
      %p76 = scmp.eq.s32.totalorder %s21, 0
      %p77 = por %p75, %p76
      %p78 = scmp.ne.s32.totalorder %s66, %s67
      %p79 = scmp.eq.s32.totalorder %s22, 1
      %p80 = por %p78, %p79
      %p82 = scmp.ne.s32.totalorder %s67, %s81
      %p83 = scmp.eq.s32.totalorder %s22, 0
      %p84 = por %p82, %p83
      %s86 = sadd.s32 %s85, 1
      %p89 = scmp.eq.s32.totalorder %s16, 1
      %p90 = scmp.ne.s32.totalorder %s85, %s87
      %p91 = scmp.eq.s32.totalorder %s16, 0
      %p92 = por %p90, %p91
      %p93 = scmp.ne.s32.totalorder %s85, %s87
      %p94 = scmp.eq.s32.totalorder %s21, 1
      %p95 = por %p93, %p94
      %p96 = scmp.ne.s32.totalorder %s87, %s88
      %p97 = scmp.eq.s32.totalorder %s21, 0
      %p98 = por %p96, %p97
      %p99 = scmp.ne.s32.totalorder %s87, %s88
      %p100 = scmp.eq.s32.totalorder %s22, 1
      %p101 = por %p99, %p100
      %p103 = scmp.ne.s32.totalorder %s88, %s102
      %p104 = scmp.eq.s32.totalorder %s22, 0
      %p105 = por %p103, %p104
      %s106 = ssub.s32 %s23, %s35
      %s107 = ssub.s32 %s24, %s31
      %s108 = sor.u32 %s106, %s107
      %p109 = scmp.eq.s32.totalorder %s108, 0
      %s111 = sadd.s32 %s110, 1
      %s112 = scalar_select %p109, %s110, %s111
      %p115 = pneg %p109
      %p116 = scmp.eq.s32.totalorder %s16, 1
      %p117 = por %p115, %p116
      %p118 = scmp.ne.s32.totalorder %s110, %s113
      %p119 = scmp.eq.s32.totalorder %s16, 0
      %p120 = por %p118, %p119
      %p121 = scmp.ne.s32.totalorder %s110, %s113
      %p122 = scmp.eq.s32.totalorder %s21, 1
      %p123 = por %p121, %p122
      %p124 = scmp.ne.s32.totalorder %s113, %s114
      %p125 = scmp.eq.s32.totalorder %s21, 0
      %p126 = por %p124, %p125
      %p127 = scmp.ne.s32.totalorder %s113, %s114
      %p128 = scmp.eq.s32.totalorder %s22, 1
      %p129 = por %p127, %p128
      %p131 = scmp.ne.s32.totalorder %s114, %s130
      %p132 = scmp.eq.s32.totalorder %s22, 0
      %p133 = por %p131, %p132
      %p134 = scmp.le.s32.totalorder 1, %s16
      %p135 = scmp.lt.s32.totalorder %s16, 3
      %p136 = pnand %p134, %p135
      %p137 = pneg %p136
      // Predicated region
      $region9: #{multi_head_attention.5} parent=5 // pred_check
        _
      $region10: #{multi_head_attention.5} parent=5 // pred_check_branch
        %139 = sbr.rel (%p136) target = $region12
      $region11: #{multi_head_attention.5} parent=5 // pred_region
        %s140 = ssub.s32 %s16, 1
        // Predicated region
        $region13: #{multi_head_attention.5} parent=11 // pred_check
          %p141 = pneg %p77
        $region14: #{multi_head_attention.5} parent=11 // pred_check_branch
          %143 = sbr.rel (%p141) target = $region16
        $region15: #{multi_head_attention.5} parent=11 // pred_region
          %s145 = ssub.s32 256, 256
          %146 = vsyncadd [#allocation6], %s145
          %s147 = sshll.u32 [#allocation5], 4
          %s148 = int_to_ptr.vmem [resolvable:$true] %s147
          %153 = dma.hbm_to_vmem [thread:$0]  %s1, 256, %s148, [#allocation6], 64, 64, 4
        $region16: #{multi_head_attention.5} parent=11 // pred_fallthru
          _
        // Predicated region
        $region17: #{multi_head_attention.5} parent=11 // pred_check
          %p154 = pneg %p98
        $region18: #{multi_head_attention.5} parent=11 // pred_check_branch
          %156 = sbr.rel (%p154) target = $region20
        $region19: #{multi_head_attention.5} parent=11 // pred_region
          %s158 = ssub.s32 16, 16
          %159 = vsyncadd [#allocation6], %s158
          %s161 = sshll.u32 [#allocation7], 4
          %s162 = int_to_ptr.vmem [resolvable:$true] %s161
          %164 = dma.hbm_to_vmem [thread:$0]  %s2, 16, %s162, [#allocation6]
        $region20: #{multi_head_attention.5} parent=11 // pred_fallthru
          _
      $region12: #{multi_head_attention.5} parent=5 // pred_fallthru
        _
      %p165 = scmp.lt.s32.totalorder %s16, 2
      // Predicated region
      $region21: #{multi_head_attention.5} parent=5 // pred_check
        %p166 = pneg %p165
      $region22: #{multi_head_attention.5} parent=5 // pred_check_branch
        %168 = sbr.rel (%p166) target = $region24
      $region23: #{multi_head_attention.5} parent=5 // pred_region
        // Predicated region
        $region25: #{multi_head_attention.5} parent=23 // pred_check
          %p169 = pneg %p50
        $region26: #{multi_head_attention.5} parent=23 // pred_check_branch
          %171 = sbr.rel (%p169) target = $region28
        $region27: #{multi_head_attention.5} parent=23 // pred_region
          %s172 = sand.u32 %s40, 1
          %s173 = scalar_lea.sflag [#allocation3], %s172
          %s174 = sand.u32 %s40, 1
          %s175 = smul.addr %s174, 4
          %s176 = scalar_lea.vmem [#allocation2], %s175
          %s178 = ssub.s32 64, 64
          %179 = vsyncadd %s173, %s178
          %s180 = sadd.s32 %s24, %s23
          %s181 = smul.addr %s180, 64
          %s182 = scalar_lea.hbm %s0, %s181
          %s184 = sshll.u32 %s176, 4
          %s185 = int_to_ptr.vmem [resolvable:$true] %s184
          %187 = dma.hbm_to_vmem [thread:$0]  %s182, 64, %s185, %s173
        $region28: #{multi_head_attention.5} parent=23 // pred_fallthru
          _
      $region24: #{multi_head_attention.5} parent=5 // pred_fallthru
        _
      %p188 = scmp.le.s32.totalorder 1, %s16
      %p189 = scmp.lt.s32.totalorder %s16, 3
      %p190 = pnand %p188, %p189
      %p191 = pneg %p190
      // Predicated region
      $region29: #{multi_head_attention.5} parent=5 // pred_check
        _
      $region30: #{multi_head_attention.5} parent=5 // pred_check_branch
        %193 = sbr.rel (%p190) target = $region32
      $region31: #{multi_head_attention.5} parent=5 // pred_region
        %s194 = ssub.s32 %s16, 1
        %s195 = sand.u32 %s43, 1
        %s196 = scalar_lea.sflag [#allocation3], %s195
        %s197 = sand.u32 %s43, 1
        %s198 = smul.addr %s197, 4
        %s199 = scalar_lea.vmem [#allocation2], %s198
        // Predicated region
        $region33: #{multi_head_attention.5} parent=31 // pred_check
          %p200 = pneg %p56
        $region34: #{multi_head_attention.5} parent=31 // pred_check_branch
          %202 = sbr.rel (%p200) target = $region36
        $region35: #{multi_head_attention.5} parent=31 // pred_region
          %203 = dma.done %s196, 64
        $region36: #{multi_head_attention.5} parent=31 // pred_fallthru
          _
        // Predicated region
        $region37: #{multi_head_attention.5} parent=31 // pred_check
          %p204 = pneg %p77
        $region38: #{multi_head_attention.5} parent=31 // pred_check_branch
          %206 = sbr.rel (%p204) target = $region40
        $region39: #{multi_head_attention.5} parent=31 // pred_region
          %207 = dma.done [#allocation6], 256
        $region40: #{multi_head_attention.5} parent=31 // pred_fallthru
          _
        // Predicated region
        $region41: #{multi_head_attention.5} parent=31 // pred_check
          %p208 = pneg %p98
        $region42: #{multi_head_attention.5} parent=31 // pred_check_branch
          %210 = sbr.rel (%p208) target = $region44
        $region43: #{multi_head_attention.5} parent=31 // pred_region
          %211 = dma.done [#allocation6], 16
        $region44: #{multi_head_attention.5} parent=31 // pred_fallthru
          _
        %s212 = sand.u32 %s43, 1
        %s213 = scalar_lea.sflag [#allocation3], %s212
        %s214 = sand.u32 %s43, 1
        %s215 = smul.addr %s214, 4
        %s216 = scalar_lea.vmem [#allocation2], %s215
        %p217 = pneg %p56
        %p218 = pneg %p53
        %p219 = pneg %p77
        %p220 = pneg %p74
        %p221 = pneg %p98
        %p222 = pneg %p95
        %p223 = pneg %p126
        %p224 = pneg %p123
        %s225 = sand.u32 %s113, 1
        %s226 = scalar_lea.sflag [#allocation4], %s225
        %s227 = sand.u32 %s113, 1
        %s228 = smul.addr %s227, 8
        %s229 = scalar_lea.vmem [#allocation8], %s228
        %v231 = vld [vmem:[%s199] sm:$0xf]
        %v232 = vld [vmem:[#allocation5] sm:$0xf]
        %v233 = vld [vmem:[#allocation5 + $0x4] sm:$0xf]
        %v234 = vld [vmem:[#allocation5 + $0x8] sm:$0xf]
        %v235 = vld [vmem:[#allocation5 + $0xc] sm:$0xf]
        %v236 = vld [vmem:[#allocation7] sm:$0x1]
        %v238 = vlaneseq
        %v239 = vshrl.u32 %v238, 7
        %v240 = vsub.s32 0, %v239
        %v241 = vrot.slane %v236, %v240
        %v247 = vunpack.c.l.b16 %v232
        %v248 = vunpack.c.l.b16 %v233
        %v249 = vunpack.c.l.b16 %v234
        %v250 = vunpack.c.l.b16 %v235
        %v251 = vpack.c.b16 %v248, %v247
        %v252 = vpack.c.b16 %v250, %v249
        %vm255 = vcmask 261120
        %v257 = vsel %vm255, %v231, 0
        %259 = vmatprep.subr.bf16.mxu0 0
        %260 = vmatpush1.bf16.msra.mxu0 %v251
        %261 = vmatprep.subr.bf16.mxu0 0
        %262 = vmatpush1.bf16.msra.mxu0 %v252
        %263 = vmatprep.subr.bf16.mxu0 0
        %264 = vmatpush1.bf16.msra.mxu0 0
        %265 = vmatprep.subr.bf16.mxu0 0
        %266 = vmatpush1.bf16.msra.mxu0 0
        %267 = vmatprep.subr.bf16.mxu0 0
        %268 = vmatpush1.bf16.msra.mxu0 0
        %269 = vmatprep.subr.bf16.mxu0 0
        %270 = vmatpush1.bf16.msra.mxu0 0
        %271 = vmatprep.subr.bf16.mxu0 0
        %272 = vmatpush1.bf16.msra.mxu0 0
        %273 = vmatprep.subr.bf16.mxu0 0
        %274 = vmatpush1.bf16.msra.mxu0 0
        %275 = vmatprep.subr.bf16.mxu0 0
        %276 = vmatpush1.bf16.msra.mxu0 0
        %277 = vmatprep.subr.bf16.mxu0 0
        %278 = vmatpush1.bf16.msra.mxu0 0
        %279 = vmatprep.subr.bf16.mxu0 0
        %280 = vmatpush1.bf16.msra.mxu0 0
        %281 = vmatprep.subr.bf16.mxu0 0
        %282 = vmatpush1.bf16.msra.mxu0 0
        %283 = vmatprep.subr.bf16.mxu0 0
        %284 = vmatpush1.bf16.msra.mxu0 0
        %285 = vmatprep.subr.bf16.mxu0 0
        %286 = vmatpush1.bf16.msra.mxu0 0
        %287 = vmatprep.subr.bf16.mxu0 0
        %288 = vmatpush1.bf16.msra.mxu0 0
        %289 = vmatprep.subr.bf16.mxu0 0
        %290 = vmatpush1.bf16.msra.mxu0 0
        %291 = vmatprep.mubr.bf16.mxu0 0
        %292 = vmatmul.mubr.bf16.gmra.mrb[0].mxu0 %v257
        %v293 = vpop.f32.mrb[0].mxu0
        %v294 = vadd.f32 %v241, %v293
        %v295 = vpop.f32.mrb[0].mxu0
        %v296 = vpop.f32.mrb[0].mxu0
        %v297 = vpop.f32.mrb[0].mxu0
        %298 = vdwg.mxu0
        %299 = vst.msk [vmem:[%s229] sm:$0xff] %vm255, %v294
        %s300 = sand.u32 %s113, 1
        %s301 = scalar_lea.sflag [#allocation4], %s300
        %s302 = sand.u32 %s113, 1
        %s303 = smul.addr %s302, 8
        %s304 = scalar_lea.vmem [#allocation8], %s303
        // Predicated region
        $region45: #{multi_head_attention.5} parent=31 // pred_check
          %p305 = pneg %p123
        $region46: #{multi_head_attention.5} parent=31 // pred_check_branch
          %307 = sbr.rel (%p305) target = $region48
        $region47: #{multi_head_attention.5} parent=31 // pred_region
          %s309 = ssub.s32 128, 128
          %310 = vsyncadd %s301, %s309
          %s311 = sadd.s32 %s26, %s25
          %s312 = smul.addr %s311, 128
          %s313 = scalar_lea.hbm %s3, %s312
          %s315 = sshll.u32 %s304, 4
          %s316 = int_to_ptr.vmem [resolvable:$true] %s315
          %318 = dma.vmem_to_hbm [thread:$0]  %s316, 128, %s313, %s301
        $region48: #{multi_head_attention.5} parent=31 // pred_fallthru
          _
      $region32: #{multi_head_attention.5} parent=5 // pred_fallthru
        _
      %p319 = scmp.le.s32.totalorder 2, %s16
      // Predicated region
      $region49: #{multi_head_attention.5} parent=5 // pred_check
        %p320 = pneg %p319
      $region50: #{multi_head_attention.5} parent=5 // pred_check_branch
        %322 = sbr.rel (%p320) target = $region52
      $region51: #{multi_head_attention.5} parent=5 // pred_region
        %s323 = ssub.s32 %s16, 2
        // Predicated region
        $region53: #{multi_head_attention.5} parent=51 // pred_check
          %p324 = pneg %p129
        $region54: #{multi_head_attention.5} parent=51 // pred_check_branch
          %326 = sbr.rel (%p324) target = $region56
        $region55: #{multi_head_attention.5} parent=51 // pred_region
          %s327 = sand.u32 %s114, 1
          %s328 = scalar_lea.sflag [#allocation4], %s327
          %s329 = sand.u32 %s114, 1
          %s330 = smul.addr %s329, 8
          %s331 = scalar_lea.vmem [#allocation8], %s330
          %332 = dma.done %s328, 128
        $region56: #{multi_head_attention.5} parent=51 // pred_fallthru
          _
      $region52: #{multi_head_attention.5} parent=5 // pred_fallthru
        _
    $region6: #{multi_head_attention.5} parent=1 // loop_footer
      %s20 = sadd.s32 1, %s16
    $region7: #{multi_head_attention.5} parent=1 // loop_footer_branch
      %15 = sbr.rel target = $region3
    $region8: #{multi_head_attention.5} parent=1 // loop_exit
      _
    %333 = vsyncpa [#allocation3], 1
    %s334 = scalar_lea.sflag [#allocation3], 1
    %335 = vsyncpa %s334, 1
    %336 = vsyncpa [#allocation6], 1
    %337 = vsyncpa [#allocation4], 1
    %s338 = scalar_lea.sflag [#allocation4], 1
    %339 = vsyncpa %s338, 1

</llo_original>
